<compile_context>
chip_gen: v6e
topology: v6e:2x2x1
jax: 0.10.0
libtpu: 0.0.40
codegen_flags: <defaults>
</compile_context>

<pallas_src>
import jax
import jax.numpy as jnp
from jax import lax
from jax.experimental import pallas as pl
from jax.experimental.pallas import tpu as pltpu

EPS = 1e-5
K_TILE = 256


def add_conv_bn_kernel(xa_ref, xb_ref, w_ref, g_ref, b_ref, o_ref):
    # xa_ref, xb_ref : [C, P]  f32
    # w_ref          : [TK, C] bf16   (one K tile of the 1x1-conv weight)
    # g_ref, b_ref   : [TK, 1] f32
    # o_ref          : [TK, P] f32
    x = (xa_ref[...] + xb_ref[...]).astype(jnp.bfloat16)              # add (VPU) + bf16 cast
    y = jnp.dot(w_ref[...], x, preferred_element_type=jnp.float32)    # 1x1 conv (MXU, f32 acc)

    # One-pass BatchNorm (training mode): per-channel stats over P = N*H*W.
    inv_p = 1.0 / y.shape[1]
    s = jnp.sum(y, axis=1, keepdims=True)                             # [TK, 1]
    ss = jnp.sum(y * y, axis=1, keepdims=True)                        # [TK, 1]
    mean = s * inv_p
    var = ss * inv_p - mean * mean                                    # biased variance
    scale = g_ref[...] * lax.rsqrt(var + EPS)                         # gamma / sqrt(var+eps)
    shift = b_ref[...] - mean * scale
    o_ref[...] = y * scale + shift                                    # single FMA per element


def make_add_conv_bn(weight, gamma, beta, *, k_tile=K_TILE):
    """weight: [K, C, 1, 1]; gamma, beta: [K].  Params are prepped ONCE here."""
    k, c = int(weight.shape[0]), int(weight.shape[1])
    n_tiles = pl.cdiv(k, k_tile)
    k_pad = n_tiles * k_tile  # 1392 -> 1536

    # Constant prep hoisted out of the per-call path (no per-call transpose/cast).
    w_mat = weight.reshape(k, c).astype(jnp.bfloat16)
    w_mat = jnp.pad(w_mat, ((0, k_pad - k), (0, 0)))
    g2 = jnp.pad(gamma.astype(jnp.float32).reshape(k, 1), ((0, k_pad - k), (0, 0)))
    b2 = jnp.pad(beta.astype(jnp.float32).reshape(k, 1), ((0, k_pad - k), (0, 0)))

    @jax.jit
    def fwd(x320, x305):
        n, c_, h, w = x320.shape
        p = n * h * w
        if n == 1:
            # Pure reshapes, no transpose glue.
            xa = x320.reshape(c_, p).astype(jnp.float32)
            xb = x305.reshape(c_, p).astype(jnp.float32)
        else:
            xa = jnp.transpose(x320, (1, 0, 2, 3)).reshape(c_, p).astype(jnp.float32)
            xb = jnp.transpose(x305, (1, 0, 2, 3)).reshape(c_, p).astype(jnp.float32)

        cost = pl.CostEstimate(
            flops=2 * p * c_ * k_pad,
            transcendentals=k_pad,
            bytes_accessed=w_mat.size * 2 + (xa.size + xb.size + k_pad * p) * 4,
        )

        out_pad = pl.pallas_call(
            add_conv_bn_kernel,
            out_shape=jax.ShapeDtypeStruct((k_pad, p), jnp.float32),
            grid_spec=pltpu.PrefetchScalarGridSpec(
                num_scalar_prefetch=0,
                grid=(n_tiles,),
                in_specs=[
                    pl.BlockSpec((c_, p), lambda i: (0, 0)),       # xa (resident)
                    pl.BlockSpec((c_, p), lambda i: (0, 0)),       # xb (resident)
                    pl.BlockSpec((k_tile, c_), lambda i: (i, 0)),  # weight K tile
                    pl.BlockSpec((k_tile, 1), lambda i: (i, 0)),   # gamma K tile
                    pl.BlockSpec((k_tile, 1), lambda i: (i, 0)),   # beta  K tile
                ],
                out_specs=pl.BlockSpec((k_tile, p), lambda i: (i, 0)),
            ),
            compiler_params=pltpu.CompilerParams(
                dimension_semantics=("parallel",)),
            cost_estimate=cost,
        )(xa, xb, w_mat, g2, b2)

        out = out_pad[:k]  # drop K padding
        if n == 1:
            return out.reshape(1, k, h, w)
        return jnp.transpose(out.reshape(k, n, h, w), (1, 0, 2, 3))

    return fwd


if __name__ == "__main__":
    key = jax.random.PRNGKey(0)
    k_x320, k_x305, k_w, k_g, k_b = jax.random.split(key, 5)

    N, C, H, W = 1, 232, 7, 7
    K = 1392

    x320 = jax.random.normal(k_x320, (N, C, H, W), dtype=jnp.float32)
    x305 = jax.random.normal(k_x305, (N, C, H, W), dtype=jnp.float32)

    # Deterministic synthetic parameters.
    weight = jax.random.normal(k_w, (K, C, 1, 1), dtype=jnp.float32) * 0.05
    gamma = jax.random.uniform(k_g, (K,), minval=0.5, maxval=1.5, dtype=jnp.float32)
    beta = jax.random.normal(k_b, (K,), dtype=jnp.float32) * 0.1

    fwd = make_add_conv_bn(weight, gamma, beta)
    out = jax.block_until_ready(fwd(x320, x305))
    assert out.shape == (N, K, H, W), out.shape

    # Reference in plain JAX (same training-mode BN semantics, same bf16 MXU operands).
    x = x320 + x305
    xp = x.reshape(C, H * W)
    w2 = weight.reshape(K, C)
    y = jnp.dot(w2.astype(jnp.bfloat16), xp.astype(jnp.bfloat16),
                preferred_element_type=jnp.float32)
    mean = jnp.mean(y, axis=1, keepdims=True)
    var = jnp.mean((y - mean) ** 2, axis=1, keepdims=True)
    ref = (y - mean) / jnp.sqrt(var + EPS) * gamma[:, None] + beta[:, None]
    ref = ref.reshape(N, K, H, W)

    err = float(jnp.max(jnp.abs(out - ref)))
    assert jnp.allclose(out, ref, atol=1e-2, rtol=1e-2), err

    # TODO(synk): PyTorch BatchNorm2d also updates running_mean/running_var
    # (momentum=0.1) as a training-time side effect; not modeled here since it
    # does not affect the returned tensor.

    print("KERNEL_OK")
</pallas_src>

<mosaic_0001>
module attributes {stable_mosaic.version = 11 : i64} {
  func.func @add_conv_bn_kernel(%arg0: i32, %arg1: memref<232x49xf32, #tpu.memory_space<vmem>>, %arg2: memref<232x49xf32, #tpu.memory_space<vmem>>, %arg3: memref<256x232xbf16, #tpu.memory_space<vmem>>, %arg4: memref<256x1xf32, #tpu.memory_space<vmem>>, %arg5: memref<256x1xf32, #tpu.memory_space<vmem>>, %arg6: memref<256x49xf32, #tpu.memory_space<vmem>>) attributes {dimension_semantics = [#tpu.dimension_semantics<parallel>], iteration_bounds = array<i64: 6>, scalar_prefetch = 0 : i64, scratch_operands = 0 : i64, tpu.core_type = #tpu.core_type<tc>, window_params = [{pipeline_mode = #tpu.pipeline_mode<synchronous>, transform_indices = @transform_0, window_bounds = array<i64: 232, 49>}, {pipeline_mode = #tpu.pipeline_mode<synchronous>, transform_indices = @transform_1, window_bounds = array<i64: 232, 49>}, {transform_indices = @transform_2, window_bounds = array<i64: 256, 232>}, {transform_indices = @transform_3, window_bounds = array<i64: 256, 1>}, {transform_indices = @transform_4, window_bounds = array<i64: 256, 1>}, {transform_indices = @transform_5, window_bounds = array<i64: 256, 49>}]} {
    %c0 = arith.constant 0 : index
    %c0_0 = arith.constant 0 : index
    %0 = vector.load %arg1[%c0, %c0_0] : memref<232x49xf32, #tpu.memory_space<vmem>>, vector<232x49xf32>
    %c0_1 = arith.constant 0 : index
    %c0_2 = arith.constant 0 : index
    %1 = vector.load %arg2[%c0_1, %c0_2] : memref<232x49xf32, #tpu.memory_space<vmem>>, vector<232x49xf32>
    %2 = arith.addf %0, %1 : vector<232x49xf32>
    %3 = arith.truncf %2 : vector<232x49xf32> to vector<232x49xbf16>
    %c0_3 = arith.constant 0 : index
    %c0_4 = arith.constant 0 : index
    %4 = vector.load %arg3[%c0_3, %c0_4] : memref<256x232xbf16, #tpu.memory_space<vmem>>, vector<256x232xbf16>
    %cst = arith.constant dense<0.000000e+00> : vector<256x49xf32>
    %5 = tpu.matmul %4, %3, %cst {dimension_numbers = #tpu.dot_dimension_numbers<[1], [0], [0], [1], [0, 0, 1, 1], [], []>} : vector<256x232xbf16>, vector<232x49xbf16>, vector<256x49xf32> -> vector<256x49xf32>
    %cst_5 = arith.constant dense<0.000000e+00> : vector<256xf32>
    %6 = vector.multi_reduction <add>, %5, %cst_5 [1] : vector<256x49xf32> to vector<256xf32>
    %7 = vector.shape_cast %6 : vector<256xf32> to vector<256x1xf32>
    %8 = arith.mulf %5, %5 : vector<256x49xf32>
    %cst_6 = arith.constant dense<0.000000e+00> : vector<256xf32>
    %9 = vector.multi_reduction <add>, %8, %cst_6 [1] : vector<256x49xf32> to vector<256xf32>
    %10 = vector.shape_cast %9 : vector<256xf32> to vector<256x1xf32>
    %cst_7 = arith.constant 0.0204081628 : f32
    %11 = vector.broadcast %cst_7 : f32 to vector<256x1xf32>
    %12 = arith.mulf %7, %11 : vector<256x1xf32>
    %cst_8 = arith.constant 0.0204081628 : f32
    %13 = vector.broadcast %cst_8 : f32 to vector<256x1xf32>
    %14 = arith.mulf %10, %13 : vector<256x1xf32>
    %15 = arith.mulf %12, %12 : vector<256x1xf32>
    %16 = arith.subf %14, %15 : vector<256x1xf32>
    %c0_9 = arith.constant 0 : index
    %c0_10 = arith.constant 0 : index
    %17 = vector.load %arg4[%c0_9, %c0_10] : memref<256x1xf32, #tpu.memory_space<vmem>>, vector<256x1xf32>
    %cst_11 = arith.constant 9.99999974E-6 : f32
    %18 = vector.broadcast %cst_11 : f32 to vector<256x1xf32>
    %19 = arith.addf %16, %18 : vector<256x1xf32>
    %20 = math.rsqrt %19 : vector<256x1xf32>
    %21 = arith.mulf %17, %20 : vector<256x1xf32>
    %c0_12 = arith.constant 0 : index
    %c0_13 = arith.constant 0 : index
    %22 = vector.load %arg5[%c0_12, %c0_13] : memref<256x1xf32, #tpu.memory_space<vmem>>, vector<256x1xf32>
    %23 = arith.mulf %12, %21 : vector<256x1xf32>
    %24 = arith.subf %22, %23 : vector<256x1xf32>
    %25 = vector.broadcast %21 : vector<256x1xf32> to vector<256x49xf32>
    %26 = arith.mulf %5, %25 : vector<256x49xf32>
    %27 = vector.broadcast %24 : vector<256x1xf32> to vector<256x49xf32>
    %28 = arith.addf %26, %27 : vector<256x49xf32>
    %c0_14 = arith.constant 0 : index
    %c0_15 = arith.constant 0 : index
    %29 = vector.load %arg6[%c0_14, %c0_15] : memref<256x49xf32, #tpu.memory_space<vmem>>, vector<256x49xf32>
    tpu.vector_store %arg6[%c0_14, %c0_15], %28 {strides = array<i32>} : memref<256x49xf32, #tpu.memory_space<vmem>>, vector<256x49xf32>,
    return
  }
  func.func @transform_0(%arg0: i32) -> (i32, i32) {
    %c0_i32 = arith.constant 0 : i32
    %c0_i32_0 = arith.constant 0 : i32
    %c0_i32_1 = arith.constant 0 : i32
    return %c0_i32, %c0_i32_0 : i32, i32
  }
  func.func @transform_1(%arg0: i32) -> (i32, i32) {
    %c0_i32 = arith.constant 0 : i32
    %c0_i32_0 = arith.constant 0 : i32
    %c0_i32_1 = arith.constant 0 : i32
    return %c0_i32, %c0_i32_0 : i32, i32
  }
  func.func @transform_2(%arg0: i32) -> (i32, i32) {
    %c0_i32 = arith.constant 0 : i32
    %c0_i32_0 = arith.constant 0 : i32
    return %arg0, %c0_i32 : i32, i32
  }
  func.func @transform_3(%arg0: i32) -> (i32, i32) {
    %c0_i32 = arith.constant 0 : i32
    %c0_i32_0 = arith.constant 0 : i32
    return %arg0, %c0_i32 : i32, i32
  }
  func.func @transform_4(%arg0: i32) -> (i32, i32) {
    %c0_i32 = arith.constant 0 : i32
    %c0_i32_0 = arith.constant 0 : i32
    return %arg0, %c0_i32 : i32, i32
  }
  func.func @transform_5(%arg0: i32) -> (i32, i32) {
    %c0_i32 = arith.constant 0 : i32
    %c0_i32_0 = arith.constant 0 : i32
    return %arg0, %c0_i32 : i32, i32
  }
}

</mosaic_0001>

<llo_original>
// kernel: fwd.1
$region0: #{fwd.1}
  #allocation0 [shape = 'u32[]', space=smem, size = 0x4, offset = 0x4, fixed_abs, tag = 'smem constant byte address 0x4 - core index']
  #allocation1 [shape = 'u32[144,128]{1,0:T(1,128)}', space=vmem, size = 0x12000, scoped, tag = 'internal scratch']
  %s0 = inlined_call_operand.vmem [shape: f32[232,49], index: 0, kind: input, shape index: {}]
  %s1 = inlined_call_operand.vmem [shape: f32[232,49], index: 1, kind: input, shape index: {}]
  %s2 = inlined_call_operand.hbm [shape: bf16[1536,232], index: 2, kind: input, shape index: {}]
  %s3 = inlined_call_operand.hbm [shape: f32[1536,1], index: 3, kind: input, shape index: {}]
  %s4 = inlined_call_operand.vmem [shape: f32[1536,1], index: 4, kind: input, shape index: {}]
  %s5 = inlined_call_operand.vmem [shape: f32[1536,49], index: 5, kind: output, shape index: {}]
  %s6 = sld [smem:[#allocation0]]
  $region61: #{fwd.1} parent=0
    _
  %s8 = ssub.s32 1, %s6
  %s9 = scalar_select 0, %s8, %s6
  $region1: #{fwd.1} parent=0
    #allocation2 [shape = 'u8[262144]{0}', space=vmem, size = 0x40000, scoped, tag = 'input window, operand 2']
    #allocation3 [shape = 's32[2]{0}', space=sflag, size = 0x8, scoped, tag = 'scoped memory for fwd.1']
    #allocation4 [shape = 'u8[262144]{0}', space=vmem, size = 0x40000, scoped, tag = 'input window, operand 3']
    #allocation5 [shape = 's32[2]{0}', space=sflag, size = 0x8, scoped, tag = 'scoped memory for fwd.1']
    %10 = vsyncpa [#allocation3], 0
    %s11 = scalar_lea.sflag [#allocation3], 1
    %12 = vsyncpa %s11, 0
    %13 = vsyncpa [#allocation5], 0
    %s14 = scalar_lea.sflag [#allocation5], 1
    %15 = vsyncpa %s14, 0
    loop: start=0, step=1, limit=8
    $region2: #{fwd.1} parent=1 // loop_pre_header
      _
    $region3: #{fwd.1} parent=1 // loop_header
      %s17 = sphi 0, %s21
      %p18 = scmp.ge.s32.totalorder %s17, 8
      %s25 = sphi 0, %s25
      %s27 = sphi 0, %s25
      %s28 = sphi 0, %s27
      %s42 = sphi 0, %s28
      %s46 = sphi 0, %s46
      %s48 = sphi 0, %s46
      %s49 = sphi 0, %s48
      %s63 = sphi 0, %s49
      %s69 = sphi 0, %s71
      %s72 = sphi 0, %s69
      %s73 = sphi 0, %s72
      %s89 = sphi 0, %s73
      %s95 = sphi 0, %s97
      %s98 = sphi 0, %s95
      %s99 = sphi 0, %s98
      %s115 = sphi 0, %s99
      %s121 = sphi 0, %s123
      %s124 = sphi 0, %s121
      %s125 = sphi 0, %s124
      %s141 = sphi 0, %s125
      %s147 = sphi 0, %s149
      %s150 = sphi 0, %s147
      %s151 = sphi 0, %s150
      %s167 = sphi 0, %s151
    $region4: #{fwd.1} parent=1 // loop_header_branch
      %20 = sbr.rel (%p18) target = $region8
    $region5: #{fwd.1} parent=1 // loop_body
      %s22 = ssub.s32 %s17, 1
      %s23 = ssub.s32 %s17, 2
      %s24 = sadd.s32 %s17, 1
      %s26 = sadd.s32 %s25, 1
      %p29 = scmp.eq.s32.totalorder %s17, 5
      %p30 = scmp.ne.s32.totalorder %s25, %s27
      %p31 = scmp.eq.s32.totalorder %s17, 0
      %p32 = por %p30, %p31
      %p33 = scmp.ne.s32.totalorder %s25, %s27
      %p34 = scmp.eq.s32.totalorder %s22, 5
      %p35 = por %p33, %p34
      %p36 = scmp.ne.s32.totalorder %s27, %s28
      %p37 = scmp.eq.s32.totalorder %s22, 0
      %p38 = por %p36, %p37
      %p39 = scmp.ne.s32.totalorder %s27, %s28
      %p40 = scmp.eq.s32.totalorder %s23, 5
      %p41 = por %p39, %p40
      %p43 = scmp.ne.s32.totalorder %s28, %s42
      %p44 = scmp.eq.s32.totalorder %s23, 0
      %p45 = por %p43, %p44
      %s47 = sadd.s32 %s46, 1
      %p50 = scmp.eq.s32.totalorder %s17, 5
      %p51 = scmp.ne.s32.totalorder %s46, %s48
      %p52 = scmp.eq.s32.totalorder %s17, 0
      %p53 = por %p51, %p52
      %p54 = scmp.ne.s32.totalorder %s46, %s48
      %p55 = scmp.eq.s32.totalorder %s22, 5
      %p56 = por %p54, %p55
      %p57 = scmp.ne.s32.totalorder %s48, %s49
      %p58 = scmp.eq.s32.totalorder %s22, 0
      %p59 = por %p57, %p58
      %p60 = scmp.ne.s32.totalorder %s48, %s49
      %p61 = scmp.eq.s32.totalorder %s23, 5
      %p62 = por %p60, %p61
      %p64 = scmp.ne.s32.totalorder %s49, %s63
      %p65 = scmp.eq.s32.totalorder %s23, 0
      %p66 = por %p64, %p65
      %s67 = ssub.s32 %s17, %s24
      %p68 = scmp.eq.s32.totalorder %s67, 0
      %s70 = sadd.s32 %s69, 1
      %s71 = scalar_select %p68, %s69, %s70
      %p74 = pneg %p68
      %p75 = scmp.eq.s32.totalorder %s17, 5
      %p76 = por %p74, %p75
      %p77 = scmp.ne.s32.totalorder %s69, %s72
      %p78 = scmp.eq.s32.totalorder %s17, 0
      %p79 = por %p77, %p78
      %p80 = scmp.ne.s32.totalorder %s69, %s72
      %p81 = scmp.eq.s32.totalorder %s22, 5
      %p82 = por %p80, %p81
      %p83 = scmp.ne.s32.totalorder %s72, %s73
      %p84 = scmp.eq.s32.totalorder %s22, 0
      %p85 = por %p83, %p84
      %p86 = scmp.ne.s32.totalorder %s72, %s73
      %p87 = scmp.eq.s32.totalorder %s23, 5
      %p88 = por %p86, %p87
      %p90 = scmp.ne.s32.totalorder %s73, %s89
      %p91 = scmp.eq.s32.totalorder %s23, 0
      %p92 = por %p90, %p91
      %s93 = ssub.s32 %s17, %s24
      %p94 = scmp.eq.s32.totalorder %s93, 0
      %s96 = sadd.s32 %s95, 1
      %s97 = scalar_select %p94, %s95, %s96
      %p100 = pneg %p94
      %p101 = scmp.eq.s32.totalorder %s17, 5
      %p102 = por %p100, %p101
      %p103 = scmp.ne.s32.totalorder %s95, %s98
      %p104 = scmp.eq.s32.totalorder %s17, 0
      %p105 = por %p103, %p104
      %p106 = scmp.ne.s32.totalorder %s95, %s98
      %p107 = scmp.eq.s32.totalorder %s22, 5
      %p108 = por %p106, %p107
      %p109 = scmp.ne.s32.totalorder %s98, %s99
      %p110 = scmp.eq.s32.totalorder %s22, 0
      %p111 = por %p109, %p110
      %p112 = scmp.ne.s32.totalorder %s98, %s99
      %p113 = scmp.eq.s32.totalorder %s23, 5
      %p114 = por %p112, %p113
      %p116 = scmp.ne.s32.totalorder %s99, %s115
      %p117 = scmp.eq.s32.totalorder %s23, 0
      %p118 = por %p116, %p117
      %s119 = ssub.s32 %s17, %s24
      %p120 = scmp.eq.s32.totalorder %s119, 0
      %s122 = sadd.s32 %s121, 1
      %s123 = scalar_select %p120, %s121, %s122
      %p126 = pneg %p120
      %p127 = scmp.eq.s32.totalorder %s17, 5
      %p128 = por %p126, %p127
      %p129 = scmp.ne.s32.totalorder %s121, %s124
      %p130 = scmp.eq.s32.totalorder %s17, 0
      %p131 = por %p129, %p130
      %p132 = scmp.ne.s32.totalorder %s121, %s124
      %p133 = scmp.eq.s32.totalorder %s22, 5
      %p134 = por %p132, %p133
      %p135 = scmp.ne.s32.totalorder %s124, %s125
      %p136 = scmp.eq.s32.totalorder %s22, 0
      %p137 = por %p135, %p136
      %p138 = scmp.ne.s32.totalorder %s124, %s125
      %p139 = scmp.eq.s32.totalorder %s23, 5
      %p140 = por %p138, %p139
      %p142 = scmp.ne.s32.totalorder %s125, %s141
      %p143 = scmp.eq.s32.totalorder %s23, 0
      %p144 = por %p142, %p143
      %s145 = ssub.s32 %s17, %s24
      %p146 = scmp.eq.s32.totalorder %s145, 0
      %s148 = sadd.s32 %s147, 1
      %s149 = scalar_select %p146, %s147, %s148
      %p152 = pneg %p146
      %p153 = scmp.eq.s32.totalorder %s17, 5
      %p154 = por %p152, %p153
      %p155 = scmp.ne.s32.totalorder %s147, %s150
      %p156 = scmp.eq.s32.totalorder %s17, 0
      %p157 = por %p155, %p156
      %p158 = scmp.ne.s32.totalorder %s147, %s150
      %p159 = scmp.eq.s32.totalorder %s22, 5
      %p160 = por %p158, %p159
      %p161 = scmp.ne.s32.totalorder %s150, %s151
      %p162 = scmp.eq.s32.totalorder %s22, 0
      %p163 = por %p161, %p162
      %p164 = scmp.ne.s32.totalorder %s150, %s151
      %p165 = scmp.eq.s32.totalorder %s23, 5
      %p166 = por %p164, %p165
      %p168 = scmp.ne.s32.totalorder %s151, %s167
      %p169 = scmp.eq.s32.totalorder %s23, 0
      %p170 = por %p168, %p169
      %p171 = scmp.le.s32.totalorder 1, %s17
      %p172 = scmp.lt.s32.totalorder %s17, 7
      %p173 = pnand %p171, %p172
      %p174 = pneg %p173
      // Predicated region
      $region9: #{fwd.1} parent=5 // pred_check
        _
      $region10: #{fwd.1} parent=5 // pred_check_branch
        %176 = sbr.rel (%p173) target = $region12
      $region11: #{fwd.1} parent=5 // pred_region
        %s177 = ssub.s32 %s17, 1
        // Predicated region
        $region13: #{fwd.1} parent=11 // pred_check
          %p178 = pneg %p38
        $region14: #{fwd.1} parent=11 // pred_check_branch
          %180 = sbr.rel (%p178) target = $region16
        $region15: #{fwd.1} parent=11 // pred_region
          _
        $region16: #{fwd.1} parent=11 // pred_fallthru
          _
        // Predicated region
        $region17: #{fwd.1} parent=11 // pred_check
          %p181 = pneg %p59
        $region18: #{fwd.1} parent=11 // pred_check_branch
          %183 = sbr.rel (%p181) target = $region20
        $region19: #{fwd.1} parent=11 // pred_region
          _
        $region20: #{fwd.1} parent=11 // pred_fallthru
          _
      $region12: #{fwd.1} parent=5 // pred_fallthru
        _
      %p184 = scmp.lt.s32.totalorder %s17, 6
      // Predicated region
      $region21: #{fwd.1} parent=5 // pred_check
        %p185 = pneg %p184
      $region22: #{fwd.1} parent=5 // pred_check_branch
        %187 = sbr.rel (%p185) target = $region24
      $region23: #{fwd.1} parent=5 // pred_region
        // Predicated region
        $region25: #{fwd.1} parent=23 // pred_check
          %p188 = pneg %p79
        $region26: #{fwd.1} parent=23 // pred_check_branch
          %190 = sbr.rel (%p188) target = $region28
        $region27: #{fwd.1} parent=23 // pred_region
          %s191 = sand.u32 %s69, 1
          %s192 = scalar_lea.sflag [#allocation3], %s191
          %s193 = sand.u32 %s69, 1
          %s194 = smul.addr %s193, 256
          %s195 = scalar_lea.vmem [#allocation2], %s194
          %s196 = smul.u32 32, %s17
          %s198 = ssub.s32 4096, 4096
          %199 = vsyncadd %s192, %s198
          %s200 = smul.addr %s196, 2
          %s201 = smul.addr %s200, 64
          %s202 = scalar_lea.hbm %s2, %s201
          %s203 = sshll.u32 %s195, 4
          %s204 = int_to_ptr.vmem [resolvable:$true] %s203
          %209 = dma.hbm_to_vmem [thread:$0]  %s202, 4096, %s204, %s192, 128, 128, 8
        $region28: #{fwd.1} parent=23 // pred_fallthru
          _
        // Predicated region
        $region29: #{fwd.1} parent=23 // pred_check
          %p210 = pneg %p105
        $region30: #{fwd.1} parent=23 // pred_check_branch
          %212 = sbr.rel (%p210) target = $region32
        $region31: #{fwd.1} parent=23 // pred_region
          %s213 = sand.u32 %s95, 1
          %s214 = scalar_lea.sflag [#allocation5], %s213
          %s215 = sand.u32 %s95, 1
          %s216 = smul.addr %s215, 256
          %s217 = scalar_lea.vmem [#allocation4], %s216
          %s218 = smul.u32 32, %s17
          %s220 = ssub.s32 4096, 4096
          %221 = vsyncadd %s214, %s220
          %s222 = smul.addr %s218, 128
          %s223 = scalar_lea.hbm %s3, %s222
          %s224 = sshll.u32 %s217, 4
          %s225 = int_to_ptr.vmem [resolvable:$true] %s224
          %230 = dma.hbm_to_vmem [thread:$0]  %s223, 4096, %s225, %s214, 128, 128, 8
        $region32: #{fwd.1} parent=23 // pred_fallthru
          _
        // Predicated region
        $region33: #{fwd.1} parent=23 // pred_check
          %p231 = pneg %p131
        $region34: #{fwd.1} parent=23 // pred_check_branch
          %233 = sbr.rel (%p231) target = $region36
        $region35: #{fwd.1} parent=23 // pred_region
          %s234 = smul.u32 32, %s17
          %p235 = scmp.lt.s32.totalorder %s234, 191
          %s236 = scalar_select %p235, %s234, 191
          %s237 = smul.addr %s236, 8
          %s238 = scalar_lea.vmem %s4, %s237
          %s239 = smul.u32 32, %s17
        $region36: #{fwd.1} parent=23 // pred_fallthru
          _
      $region24: #{fwd.1} parent=5 // pred_fallthru
        _
      %p240 = scmp.le.s32.totalorder 1, %s17
      %p241 = scmp.lt.s32.totalorder %s17, 7
      %p242 = pnand %p240, %p241
      %p243 = pneg %p242
      // Predicated region
      $region37: #{fwd.1} parent=5 // pred_check
        _
      $region38: #{fwd.1} parent=5 // pred_check_branch
        %245 = sbr.rel (%p242) target = $region40
      $region39: #{fwd.1} parent=5 // pred_region
        %s246 = ssub.s32 %s17, 1
        %s247 = sand.u32 %s72, 1
        %s248 = scalar_lea.sflag [#allocation3], %s247
        %s249 = sand.u32 %s72, 1
        %s250 = smul.addr %s249, 256
        %s251 = scalar_lea.vmem [#allocation2], %s250
        // Predicated region
        $region41: #{fwd.1} parent=39 // pred_check
          %p252 = pneg %p85
        $region42: #{fwd.1} parent=39 // pred_check_branch
          %254 = sbr.rel (%p252) target = $region44
        $region43: #{fwd.1} parent=39 // pred_region
          %255 = dma.done %s248, 4096
        $region44: #{fwd.1} parent=39 // pred_fallthru
          _
        %s256 = sand.u32 %s98, 1
        %s257 = scalar_lea.sflag [#allocation5], %s256
        %s258 = sand.u32 %s98, 1
        %s259 = smul.addr %s258, 256
        %s260 = scalar_lea.vmem [#allocation4], %s259
        // Predicated region
        $region45: #{fwd.1} parent=39 // pred_check
          %p261 = pneg %p111
        $region46: #{fwd.1} parent=39 // pred_check_branch
          %263 = sbr.rel (%p261) target = $region48
        $region47: #{fwd.1} parent=39 // pred_region
          %264 = dma.done %s257, 4096
        $region48: #{fwd.1} parent=39 // pred_fallthru
          _
        %p265 = pneg %p38
        %p266 = pneg %p35
        %p267 = pneg %p59
        %p268 = pneg %p56
        %s269 = sand.u32 %s72, 1
        %s270 = scalar_lea.sflag [#allocation3], %s269
        %s271 = sand.u32 %s72, 1
        %s272 = smul.addr %s271, 256
        %s273 = scalar_lea.vmem [#allocation2], %s272
        %p274 = pneg %p85
        %p275 = pneg %p82
        %s276 = sand.u32 %s98, 1
        %s277 = scalar_lea.sflag [#allocation5], %s276
        %s278 = sand.u32 %s98, 1
        %s279 = smul.addr %s278, 256
        %s280 = scalar_lea.vmem [#allocation4], %s279
        %p281 = pneg %p111
        %p282 = pneg %p108
        %s283 = smul.u32 32, %s22
        %p284 = scmp.lt.s32.totalorder %s283, 191
        %s285 = scalar_select %p284, %s283, 191
        %s286 = smul.addr %s285, 8
        %s287 = scalar_lea.vmem %s4, %s286
        %p288 = pneg %p137
        %p289 = pneg %p134
        %p290 = pneg %p163
        %p291 = pneg %p160
        %s292 = smul.u32 32, %s22
        %p293 = scmp.lt.s32.totalorder %s292, 191
        %s294 = scalar_select %p293, %s292, 191
        %s295 = smul.addr %s294, 8
        %s296 = scalar_lea.vmem %s5, %s295
        %s297 = smul.u32 32, %s22
        %s298 = smul.u32 32, %s22
        %s299 = smul.u32 32, %s22
        %p300 = scmp.lt.s32.totalorder %s299, 191
        %s301 = scalar_select %p300, %s299, 191
        %s302 = smul.addr %s301, 8
        %s303 = scalar_lea.vmem %s4, %s302
        %s304 = smul.u32 32, %s22
        %s305 = smul.u32 32, %s22
        %p306 = scmp.lt.s32.totalorder %s305, 191
        %s307 = scalar_select %p306, %s305, 191
        %s308 = smul.addr %s307, 8
        %s309 = scalar_lea.vmem %s5, %s308
        %s310 = smul.u32 32, %s22
        %v312 = vld [vmem:[%s0] sm:$0xff]
        %v313 = vld [vmem:[%s0 + $0x8] sm:$0xff]
        %v314 = vld [vmem:[%s0 + $0x10] sm:$0xff]
        %v315 = vld [vmem:[%s0 + $0x18] sm:$0xff]
        %v316 = vld [vmem:[%s0 + $0x20] sm:$0xff]
        %v317 = vld [vmem:[%s0 + $0x28] sm:$0xff]
        %v318 = vld [vmem:[%s0 + $0x30] sm:$0xff]
        %v319 = vld [vmem:[%s0 + $0x38] sm:$0xff]
        %v320 = vld [vmem:[%s0 + $0x40] sm:$0xff]
        %v321 = vld [vmem:[%s0 + $0x48] sm:$0xff]
        %v322 = vld [vmem:[%s0 + $0x50] sm:$0xff]
        %v323 = vld [vmem:[%s0 + $0x58] sm:$0xff]
        %v324 = vld [vmem:[%s0 + $0x60] sm:$0xff]
        %v325 = vld [vmem:[%s0 + $0x68] sm:$0xff]
        %v326 = vld [vmem:[%s0 + $0x70] sm:$0xff]
        %v327 = vld [vmem:[%s0 + $0x78] sm:$0xff]
        %v328 = vld [vmem:[%s0 + $0x80] sm:$0xff]
        %v329 = vld [vmem:[%s0 + $0x88] sm:$0xff]
        %v330 = vld [vmem:[%s0 + $0x90] sm:$0xff]
        %v331 = vld [vmem:[%s0 + $0x98] sm:$0xff]
        %v332 = vld [vmem:[%s0 + $0xa0] sm:$0xff]
        %v333 = vld [vmem:[%s0 + $0xa8] sm:$0xff]
        %v334 = vld [vmem:[%s0 + $0xb0] sm:$0xff]
        %v335 = vld [vmem:[%s0 + $0xb8] sm:$0xff]
        %v336 = vld [vmem:[%s0 + $0xc0] sm:$0xff]
        %v337 = vld [vmem:[%s0 + $0xc8] sm:$0xff]
        %v338 = vld [vmem:[%s0 + $0xd0] sm:$0xff]
        %v339 = vld [vmem:[%s0 + $0xd8] sm:$0xff]
        %v340 = vld [vmem:[%s0 + $0xe0] sm:$0xff]
        %v341 = vld [vmem:[%s1] sm:$0xff]
        %v342 = vld [vmem:[%s1 + $0x8] sm:$0xff]
        %v343 = vld [vmem:[%s1 + $0x10] sm:$0xff]
        %v344 = vld [vmem:[%s1 + $0x18] sm:$0xff]
        %v345 = vld [vmem:[%s1 + $0x20] sm:$0xff]
        %v346 = vld [vmem:[%s1 + $0x28] sm:$0xff]
        %v347 = vld [vmem:[%s1 + $0x30] sm:$0xff]
        %v348 = vld [vmem:[%s1 + $0x38] sm:$0xff]
        %v349 = vld [vmem:[%s1 + $0x40] sm:$0xff]
        %v350 = vld [vmem:[%s1 + $0x48] sm:$0xff]
        %v351 = vld [vmem:[%s1 + $0x50] sm:$0xff]
        %v352 = vld [vmem:[%s1 + $0x58] sm:$0xff]
        %v353 = vld [vmem:[%s1 + $0x60] sm:$0xff]
        %v354 = vld [vmem:[%s1 + $0x68] sm:$0xff]
        %v355 = vld [vmem:[%s1 + $0x70] sm:$0xff]
        %v356 = vld [vmem:[%s1 + $0x78] sm:$0xff]
        %v357 = vld [vmem:[%s1 + $0x80] sm:$0xff]
        %v358 = vld [vmem:[%s1 + $0x88] sm:$0xff]
        %v359 = vld [vmem:[%s1 + $0x90] sm:$0xff]
        %v360 = vld [vmem:[%s1 + $0x98] sm:$0xff]
        %v361 = vld [vmem:[%s1 + $0xa0] sm:$0xff]
        %v362 = vld [vmem:[%s1 + $0xa8] sm:$0xff]
        %v363 = vld [vmem:[%s1 + $0xb0] sm:$0xff]
        %v364 = vld [vmem:[%s1 + $0xb8] sm:$0xff]
        %v365 = vld [vmem:[%s1 + $0xc0] sm:$0xff]
        %v366 = vld [vmem:[%s1 + $0xc8] sm:$0xff]
        %v367 = vld [vmem:[%s1 + $0xd0] sm:$0xff]
        %v368 = vld [vmem:[%s1 + $0xd8] sm:$0xff]
        %v369 = vld [vmem:[%s1 + $0xe0] sm:$0xff]
        %v370 = vadd.f32 %v312, %v341
        %v371 = vadd.f32 %v313, %v342
        %v372 = vadd.f32 %v314, %v343
        %v373 = vadd.f32 %v315, %v344
        %v374 = vadd.f32 %v316, %v345
        %v375 = vadd.f32 %v317, %v346
        %v376 = vadd.f32 %v318, %v347
        %v377 = vadd.f32 %v319, %v348
        %v378 = vadd.f32 %v320, %v349
        %v379 = vadd.f32 %v321, %v350
        %v380 = vadd.f32 %v322, %v351
        %v381 = vadd.f32 %v323, %v352
        %v382 = vadd.f32 %v324, %v353
        %v383 = vadd.f32 %v325, %v354
        %v384 = vadd.f32 %v326, %v355
        %v385 = vadd.f32 %v327, %v356
        %v386 = vadd.f32 %v328, %v357
        %v387 = vadd.f32 %v329, %v358
        %v388 = vadd.f32 %v330, %v359
        %v389 = vadd.f32 %v331, %v360
        %v390 = vadd.f32 %v332, %v361
        %v391 = vadd.f32 %v333, %v362
        %v392 = vadd.f32 %v334, %v363
        %v393 = vadd.f32 %v335, %v364
        %v394 = vadd.f32 %v336, %v365
        %v395 = vadd.f32 %v337, %v366
        %v396 = vadd.f32 %v338, %v367
        %v397 = vadd.f32 %v339, %v368
        %v398 = vadd.f32 %v340, %v369
        %v399 = vpack.c.bf16 %v371, %v370
        %v400 = vpack.c.bf16 %v373, %v372
        %v401 = vpack.c.bf16 %v375, %v374
        %v402 = vpack.c.bf16 %v377, %v376
        %v403 = vpack.c.bf16 %v379, %v378
        %v404 = vpack.c.bf16 %v381, %v380
        %v405 = vpack.c.bf16 %v383, %v382
        %v406 = vpack.c.bf16 %v385, %v384
        %v407 = vpack.c.bf16 %v387, %v386
        %v408 = vpack.c.bf16 %v389, %v388
        %v409 = vpack.c.bf16 %v391, %v390
        %v410 = vpack.c.bf16 %v393, %v392
        %v411 = vpack.c.bf16 %v395, %v394
        %v412 = vpack.c.bf16 %v397, %v396
        %v413 = vpack.c.bf16 %v398, %v398
        %v414 = vld [vmem:[%s251] sm:$0xff]
        %v415 = vld [vmem:[%s251 + $0x8] sm:$0xff]
        %v416 = vld [vmem:[%s251 + $0x10] sm:$0xff]
        %v417 = vld [vmem:[%s251 + $0x18] sm:$0xff]
        %v418 = vld [vmem:[%s251 + $0x20] sm:$0xff]
        %v419 = vld [vmem:[%s251 + $0x28] sm:$0xff]
        %v420 = vld [vmem:[%s251 + $0x30] sm:$0xff]
        %v421 = vld [vmem:[%s251 + $0x38] sm:$0xff]
        %v422 = vld [vmem:[%s251 + $0x40] sm:$0xff]
        %v423 = vld [vmem:[%s251 + $0x48] sm:$0xff]
        %v424 = vld [vmem:[%s251 + $0x50] sm:$0xff]
        %v425 = vld [vmem:[%s251 + $0x58] sm:$0xff]
        %v426 = vld [vmem:[%s251 + $0x60] sm:$0xff]
        %v427 = vld [vmem:[%s251 + $0x68] sm:$0xff]
        %v428 = vld [vmem:[%s251 + $0x70] sm:$0xff]
        %v429 = vld [vmem:[%s251 + $0x78] sm:$0xff]
        %v430 = vld [vmem:[%s251 + $0x80] sm:$0xff]
        %v431 = vld [vmem:[%s251 + $0x88] sm:$0xff]
        %v432 = vld [vmem:[%s251 + $0x90] sm:$0xff]
        %v433 = vld [vmem:[%s251 + $0x98] sm:$0xff]
        %v434 = vld [vmem:[%s251 + $0xa0] sm:$0xff]
        %v435 = vld [vmem:[%s251 + $0xa8] sm:$0xff]
        %v436 = vld [vmem:[%s251 + $0xb0] sm:$0xff]
        %v437 = vld [vmem:[%s251 + $0xb8] sm:$0xff]
        %v438 = vld [vmem:[%s251 + $0xc0] sm:$0xff]
        %v439 = vld [vmem:[%s251 + $0xc8] sm:$0xff]
        %v440 = vld [vmem:[%s251 + $0xd0] sm:$0xff]
        %v441 = vld [vmem:[%s251 + $0xd8] sm:$0xff]
        %v442 = vld [vmem:[%s251 + $0xe0] sm:$0xff]
        %v443 = vld [vmem:[%s251 + $0xe8] sm:$0xff]
        %v444 = vld [vmem:[%s251 + $0xf0] sm:$0xff]
        %v445 = vld [vmem:[%s251 + $0xf8] sm:$0xff]
        %v478 = vunpack.c.l.b16 %v414
        %v479 = vunpack.c.h.b16 %v414
        %v480 = vunpack.c.l.b16 %v415
        %v481 = vunpack.c.h.b16 %v415
        %v482 = vunpack.c.l.b16 %v416
        %v483 = vunpack.c.h.b16 %v416
        %v484 = vunpack.c.l.b16 %v417
        %v485 = vunpack.c.h.b16 %v417
        %v486 = vunpack.c.l.b16 %v418
        %v487 = vunpack.c.h.b16 %v418
        %v488 = vunpack.c.l.b16 %v419
        %v489 = vunpack.c.h.b16 %v419
        %v490 = vunpack.c.l.b16 %v420
        %v491 = vunpack.c.h.b16 %v420
        %v492 = vunpack.c.l.b16 %v421
        %v493 = vunpack.c.h.b16 %v421
        %v494 = vunpack.c.l.b16 %v422
        %v495 = vunpack.c.h.b16 %v422
        %v496 = vunpack.c.l.b16 %v423
        %v497 = vunpack.c.h.b16 %v423
        %v498 = vunpack.c.l.b16 %v424
        %v499 = vunpack.c.h.b16 %v424
        %v500 = vunpack.c.l.b16 %v425
        %v501 = vunpack.c.h.b16 %v425
        %v502 = vunpack.c.l.b16 %v426
        %v503 = vunpack.c.h.b16 %v426
        %v504 = vunpack.c.l.b16 %v427
        %v505 = vunpack.c.h.b16 %v427
        %v506 = vunpack.c.l.b16 %v428
        %v507 = vunpack.c.h.b16 %v428
        %v508 = vunpack.c.l.b16 %v429
        %v509 = vunpack.c.h.b16 %v429
        %v510 = vunpack.c.l.b16 %v430
        %v511 = vunpack.c.h.b16 %v430
        %v512 = vunpack.c.l.b16 %v431
        %v513 = vunpack.c.h.b16 %v431
        %v514 = vunpack.c.l.b16 %v432
        %v515 = vunpack.c.h.b16 %v432
        %v516 = vunpack.c.l.b16 %v433
        %v517 = vunpack.c.h.b16 %v433
        %v518 = vunpack.c.l.b16 %v434
        %v519 = vunpack.c.h.b16 %v434
        %v520 = vunpack.c.l.b16 %v435
        %v521 = vunpack.c.h.b16 %v435
        %v522 = vunpack.c.l.b16 %v436
        %v523 = vunpack.c.h.b16 %v436
        %v524 = vunpack.c.l.b16 %v437
        %v525 = vunpack.c.h.b16 %v437
        %v526 = vunpack.c.l.b16 %v438
        %v527 = vunpack.c.h.b16 %v438
        %v528 = vunpack.c.l.b16 %v439
        %v529 = vunpack.c.h.b16 %v439
        %v530 = vunpack.c.l.b16 %v440
        %v531 = vunpack.c.h.b16 %v440
        %v532 = vunpack.c.l.b16 %v441
        %v533 = vunpack.c.h.b16 %v441
        %v534 = vunpack.c.l.b16 %v442
        %v535 = vunpack.c.h.b16 %v442
        %v536 = vunpack.c.l.b16 %v443
        %v537 = vunpack.c.h.b16 %v443
        %v538 = vunpack.c.l.b16 %v444
        %v539 = vunpack.c.h.b16 %v444
        %v540 = vunpack.c.l.b16 %v445
        %v541 = vunpack.c.h.b16 %v445
        %v542 = vpack.c.b16 %v480, %v478
        %v543 = vpack.c.b16 %v481, %v479
        %v544 = vpack.c.b16 %v484, %v482
        %v545 = vpack.c.b16 %v485, %v483
        %v546 = vpack.c.b16 %v488, %v486
        %v547 = vpack.c.b16 %v489, %v487
        %v548 = vpack.c.b16 %v492, %v490
        %v549 = vpack.c.b16 %v493, %v491
        %v550 = vpack.c.b16 %v496, %v494
        %v551 = vpack.c.b16 %v497, %v495
        %v552 = vpack.c.b16 %v500, %v498
        %v553 = vpack.c.b16 %v501, %v499
        %v554 = vpack.c.b16 %v504, %v502
        %v555 = vpack.c.b16 %v505, %v503
        %v556 = vpack.c.b16 %v508, %v506
        %v557 = vpack.c.b16 %v509, %v507
        %v558 = vpack.c.b16 %v512, %v510
        %v559 = vpack.c.b16 %v513, %v511
        %v560 = vpack.c.b16 %v516, %v514
        %v561 = vpack.c.b16 %v517, %v515
        %v562 = vpack.c.b16 %v520, %v518
        %v563 = vpack.c.b16 %v521, %v519
        %v564 = vpack.c.b16 %v524, %v522
        %v565 = vpack.c.b16 %v525, %v523
        %v566 = vpack.c.b16 %v528, %v526
        %v567 = vpack.c.b16 %v529, %v527
        %v568 = vpack.c.b16 %v532, %v530
        %v569 = vpack.c.b16 %v533, %v531
        %v570 = vpack.c.b16 %v536, %v534
        %v571 = vpack.c.b16 %v537, %v535
        %v572 = vpack.c.b16 %v540, %v538
        %v573 = vpack.c.b16 %v541, %v539
        %vm590 = vcmask 850944
        %v592 = vsel %vm590, %v543, 0
        %v595 = vsel %vm590, %v545, 0
        %v598 = vsel %vm590, %v547, 0
        %v601 = vsel %vm590, %v549, 0
        %v604 = vsel %vm590, %v551, 0
        %v607 = vsel %vm590, %v553, 0
        %v610 = vsel %vm590, %v555, 0
        %v613 = vsel %vm590, %v557, 0
        %v616 = vsel %vm590, %v559, 0
        %v619 = vsel %vm590, %v561, 0
        %v622 = vsel %vm590, %v563, 0
        %v625 = vsel %vm590, %v565, 0
        %v628 = vsel %vm590, %v567, 0
        %v631 = vsel %vm590, %v569, 0
        %v634 = vsel %vm590, %v571, 0
        %v637 = vsel %vm590, %v573, 0
        %vm639 = vcmask 1043456
        %v641 = vsel %vm639, %v413, 0
        %643 = vmatprep.subr.bf16.mxu0 0
        %644 = vmatpush1.bf16.msra.mxu0 %v406
        %645 = vmatprep.subr.bf16.mxu0 0
        %646 = vmatpush1.bf16.msra.mxu0 %v405
        %647 = vmatprep.subr.bf16.mxu0 0
        %648 = vmatpush1.bf16.msra.mxu0 %v404
        %649 = vmatprep.subr.bf16.mxu0 0
        %650 = vmatpush1.bf16.msra.mxu0 %v403
        %651 = vmatprep.subr.bf16.mxu0 0
        %652 = vmatpush1.bf16.msra.mxu0 %v402
        %653 = vmatprep.subr.bf16.mxu0 0
        %654 = vmatpush1.bf16.msra.mxu0 %v401
        %655 = vmatprep.subr.bf16.mxu0 0
        %656 = vmatpush1.bf16.msra.mxu0 %v400
        %657 = vmatprep.subr.bf16.mxu0 0
        %658 = vmatpush1.bf16.msra.mxu0 %v399
        %659 = vmatprep.subr.bf16.mxu0 0
        %660 = vmatpush2.bf16.msra.mxu0 0
        %661 = vmatprep.subr.bf16.mxu0 0
        %662 = vmatpush2.bf16.msra.mxu0 %v641
        %663 = vmatprep.subr.bf16.mxu0 0
        %664 = vmatpush2.bf16.msra.mxu0 %v412
        %665 = vmatprep.subr.bf16.mxu0 0
        %666 = vmatpush2.bf16.msra.mxu0 %v411
        %667 = vmatprep.subr.bf16.mxu0 0
        %668 = vmatpush2.bf16.msra.mxu0 %v410
        %669 = vmatprep.subr.bf16.mxu0 0
        %670 = vmatpush2.bf16.msra.mxu0 %v409
        %671 = vmatprep.subr.bf16.mxu0 0
        %672 = vmatpush2.bf16.msra.mxu0 %v408
        %673 = vmatprep.subr.bf16.mxu0 0
        %674 = vmatpush2.bf16.msra.mxu0 %v407
        %675 = vmatprep.mubr.bf16.mxu0 %v592
        %676 = vmatmul.mubr.bf16.gmra.mxu0 %v542
        %v677 = vpop.f32.mrf.mxu0
        %v678 = vadd.f32 0.0, %v677
        %v679 = vpop.f32.mrf.mxu0
        %v680 = vpop.f32.mrf.mxu0
        %v681 = vadd.f32 0.0, %v680
        %v682 = vpop.f32.mrf.mxu0
        %683 = vmatprep.mubr.bf16.mxu0 %v595
        %684 = vmatmul.mubr.bf16.gmra.mxu0 %v544
        %v685 = vpop.f32.mrf.mxu0
        %v686 = vadd.f32 0.0, %v685
        %v687 = vpop.f32.mrf.mxu0
        %v688 = vpop.f32.mrf.mxu0
        %v689 = vadd.f32 0.0, %v688
        %v690 = vpop.f32.mrf.mxu0
        %691 = vmatprep.mubr.bf16.mxu0 %v598
        %692 = vmatmul.mubr.bf16.gmra.mxu0 %v546
        %v693 = vpop.f32.mrf.mxu0
        %v694 = vadd.f32 0.0, %v693
        %v695 = vpop.f32.mrf.mxu0
        %v696 = vpop.f32.mrf.mxu0
        %v697 = vadd.f32 0.0, %v696
        %v698 = vpop.f32.mrf.mxu0
        %699 = vmatprep.mubr.bf16.mxu0 %v601
        %700 = vmatmul.mubr.bf16.gmra.mxu0 %v548
        %v701 = vpop.f32.mrf.mxu0
        %v702 = vadd.f32 0.0, %v701
        %v703 = vpop.f32.mrf.mxu0
        %v704 = vpop.f32.mrf.mxu0
        %v705 = vadd.f32 0.0, %v704
        %v706 = vpop.f32.mrf.mxu0
        %707 = vmatprep.mubr.bf16.mxu0 %v604
        %708 = vmatmul.mubr.bf16.gmra.mxu0 %v550
        %v709 = vpop.f32.mrf.mxu0
        %v710 = vadd.f32 0.0, %v709
        %v711 = vpop.f32.mrf.mxu0
        %v712 = vpop.f32.mrf.mxu0
        %v713 = vadd.f32 0.0, %v712
        %v714 = vpop.f32.mrf.mxu0
        %715 = vmatprep.mubr.bf16.mxu0 %v607
        %716 = vmatmul.mubr.bf16.gmra.mxu0 %v552
        %v717 = vpop.f32.mrf.mxu0
        %v718 = vadd.f32 0.0, %v717
        %v719 = vpop.f32.mrf.mxu0
        %v720 = vpop.f32.mrf.mxu0
        %v721 = vadd.f32 0.0, %v720
        %v722 = vpop.f32.mrf.mxu0
        %723 = vmatprep.mubr.bf16.mxu0 %v610
        %724 = vmatmul.mubr.bf16.gmra.mxu0 %v554
        %v725 = vpop.f32.mrf.mxu0
        %v726 = vadd.f32 0.0, %v725
        %v727 = vpop.f32.mrf.mxu0
        %v728 = vpop.f32.mrf.mxu0
        %v729 = vadd.f32 0.0, %v728
        %v730 = vpop.f32.mrf.mxu0
        %731 = vmatprep.mubr.bf16.mxu0 %v613
        %732 = vmatmul.mubr.bf16.gmra.mxu0 %v556
        %v733 = vpop.f32.mrf.mxu0
        %v734 = vadd.f32 0.0, %v733
        %v735 = vpop.f32.mrf.mxu0
        %v736 = vpop.f32.mrf.mxu0
        %v737 = vadd.f32 0.0, %v736
        %v738 = vpop.f32.mrf.mxu0
        %739 = vmatprep.mubr.bf16.mxu0 %v616
        %740 = vmatmul.mubr.bf16.gmra.mxu0 %v558
        %v741 = vpop.f32.mrf.mxu0
        %v742 = vadd.f32 0.0, %v741
        %v743 = vpop.f32.mrf.mxu0
        %v744 = vpop.f32.mrf.mxu0
        %v745 = vadd.f32 0.0, %v744
        %v746 = vpop.f32.mrf.mxu0
        %747 = vmatprep.mubr.bf16.mxu0 %v619
        %748 = vmatmul.mubr.bf16.gmra.mxu0 %v560
        %v749 = vpop.f32.mrf.mxu0
        %v750 = vadd.f32 0.0, %v749
        %v751 = vpop.f32.mrf.mxu0
        %v752 = vpop.f32.mrf.mxu0
        %v753 = vadd.f32 0.0, %v752
        %v754 = vpop.f32.mrf.mxu0
        %755 = vmatprep.mubr.bf16.mxu0 %v622
        %756 = vmatmul.mubr.bf16.gmra.mxu0 %v562
        %v757 = vpop.f32.mrf.mxu0
        %v758 = vadd.f32 0.0, %v757
        %v759 = vpop.f32.mrf.mxu0
        %v760 = vpop.f32.mrf.mxu0
        %v761 = vadd.f32 0.0, %v760
        %v762 = vpop.f32.mrf.mxu0
        %763 = vmatprep.mubr.bf16.mxu0 %v625
        %764 = vmatmul.mubr.bf16.gmra.mxu0 %v564
        %v765 = vpop.f32.mrf.mxu0
        %v766 = vadd.f32 0.0, %v765
        %v767 = vpop.f32.mrf.mxu0
        %v768 = vpop.f32.mrf.mxu0
        %v769 = vadd.f32 0.0, %v768
        %v770 = vpop.f32.mrf.mxu0
        %771 = vmatprep.mubr.bf16.mxu0 %v628
        %772 = vmatmul.mubr.bf16.gmra.mxu0 %v566
        %v773 = vpop.f32.mrf.mxu0
        %v774 = vadd.f32 0.0, %v773
        %v775 = vpop.f32.mrf.mxu0
        %v776 = vpop.f32.mrf.mxu0
        %v777 = vadd.f32 0.0, %v776
        %v778 = vpop.f32.mrf.mxu0
        %779 = vmatprep.mubr.bf16.mxu0 %v631
        %780 = vmatmul.mubr.bf16.gmra.mxu0 %v568
        %v781 = vpop.f32.mrf.mxu0
        %v782 = vadd.f32 0.0, %v781
        %v783 = vpop.f32.mrf.mxu0
        %v784 = vpop.f32.mrf.mxu0
        %v785 = vadd.f32 0.0, %v784
        %v786 = vpop.f32.mrf.mxu0
        %787 = vmatprep.mubr.bf16.mxu0 %v634
        %788 = vmatmul.mubr.bf16.gmra.mxu0 %v570
        %v789 = vpop.f32.mrf.mxu0
        %v790 = vadd.f32 0.0, %v789
        %v791 = vpop.f32.mrf.mxu0
        %v792 = vpop.f32.mrf.mxu0
        %v793 = vadd.f32 0.0, %v792
        %v794 = vpop.f32.mrf.mxu0
        %795 = vmatprep.mubr.bf16.mxu0 %v637
        %796 = vmatmul.mubr.bf16.gmra.mxu0 %v572
        %v797 = vpop.f32.mrf.mxu0
        %v798 = vadd.f32 0.0, %v797
        %v799 = vpop.f32.mrf.mxu0
        %v800 = vpop.f32.mrf.mxu0
        %v801 = vadd.f32 0.0, %v800
        %v802 = vpop.f32.mrf.mxu0
        %803 = vdwg.mxu0
        %vm804 = vcmask 400384
        %v805 = vsel %vm804, %v678, 0.0
        %806 = vadd.xlane.f32.xlu0 %v805
        %v807 = vpop.xlane.xlu0 %806
        %v808 = vsel %vm804, %v681, 0.0
        %809 = vadd.xlane.f32.xlu0 %v808
        %v810 = vpop.xlane.xlu0 %809
        %v811 = vsel %vm804, %v686, 0.0
        %812 = vadd.xlane.f32.xlu0 %v811
        %v813 = vpop.xlane.xlu0 %812
        %v814 = vsel %vm804, %v689, 0.0
        %815 = vadd.xlane.f32.xlu0 %v814
        %v816 = vpop.xlane.xlu0 %815
        %v817 = vsel %vm804, %v694, 0.0
        %818 = vadd.xlane.f32.xlu0 %v817
        %v819 = vpop.xlane.xlu0 %818
        %v820 = vsel %vm804, %v697, 0.0
        %821 = vadd.xlane.f32.xlu0 %v820
        %v822 = vpop.xlane.xlu0 %821
        %v823 = vsel %vm804, %v702, 0.0
        %824 = vadd.xlane.f32.xlu0 %v823
        %v825 = vpop.xlane.xlu0 %824
        %v826 = vsel %vm804, %v705, 0.0
        %827 = vadd.xlane.f32.xlu0 %v826
        %v828 = vpop.xlane.xlu0 %827
        %v829 = vsel %vm804, %v710, 0.0
        %830 = vadd.xlane.f32.xlu0 %v829
        %v831 = vpop.xlane.xlu0 %830
        %v832 = vsel %vm804, %v713, 0.0
        %833 = vadd.xlane.f32.xlu0 %v832
        %v834 = vpop.xlane.xlu0 %833
        %v835 = vsel %vm804, %v718, 0.0
        %836 = vadd.xlane.f32.xlu0 %v835
        %v837 = vpop.xlane.xlu0 %836
        %v838 = vsel %vm804, %v721, 0.0
        %839 = vadd.xlane.f32.xlu0 %v838
        %v840 = vpop.xlane.xlu0 %839
        %v841 = vsel %vm804, %v726, 0.0
        %842 = vadd.xlane.f32.xlu0 %v841
        %v843 = vpop.xlane.xlu0 %842
        %v844 = vsel %vm804, %v729, 0.0
        %845 = vadd.xlane.f32.xlu0 %v844
        %v846 = vpop.xlane.xlu0 %845
        %v847 = vsel %vm804, %v734, 0.0
        %848 = vadd.xlane.f32.xlu0 %v847
        %v849 = vpop.xlane.xlu0 %848
        %v850 = vsel %vm804, %v737, 0.0
        %851 = vadd.xlane.f32.xlu0 %v850
        %v852 = vpop.xlane.xlu0 %851
        %v853 = vsel %vm804, %v742, 0.0
        %854 = vadd.xlane.f32.xlu0 %v853
        %v855 = vpop.xlane.xlu0 %854
        %v856 = vsel %vm804, %v745, 0.0
        %857 = vadd.xlane.f32.xlu0 %v856
        %v858 = vpop.xlane.xlu0 %857
        %v859 = vsel %vm804, %v750, 0.0
        %860 = vadd.xlane.f32.xlu0 %v859
        %v861 = vpop.xlane.xlu0 %860
        %v862 = vsel %vm804, %v753, 0.0
        %863 = vadd.xlane.f32.xlu0 %v862
        %v864 = vpop.xlane.xlu0 %863
        %v865 = vsel %vm804, %v758, 0.0
        %866 = vadd.xlane.f32.xlu0 %v865
        %v867 = vpop.xlane.xlu0 %866
        %v868 = vsel %vm804, %v761, 0.0
        %869 = vadd.xlane.f32.xlu0 %v868
        %v870 = vpop.xlane.xlu0 %869
        %v871 = vsel %vm804, %v766, 0.0
        %872 = vadd.xlane.f32.xlu0 %v871
        %v873 = vpop.xlane.xlu0 %872
        %v874 = vsel %vm804, %v769, 0.0
        %875 = vadd.xlane.f32.xlu0 %v874
        %v876 = vpop.xlane.xlu0 %875
        %v877 = vsel %vm804, %v774, 0.0
        %878 = vadd.xlane.f32.xlu0 %v877
        %v879 = vpop.xlane.xlu0 %878
        %v880 = vsel %vm804, %v777, 0.0
        %881 = vadd.xlane.f32.xlu0 %v880
        %v882 = vpop.xlane.xlu0 %881
        %v883 = vsel %vm804, %v782, 0.0
        %884 = vadd.xlane.f32.xlu0 %v883
        %v885 = vpop.xlane.xlu0 %884
        %v886 = vsel %vm804, %v785, 0.0
        %887 = vadd.xlane.f32.xlu0 %v886
        %v888 = vpop.xlane.xlu0 %887
        %v889 = vsel %vm804, %v790, 0.0
        %890 = vadd.xlane.f32.xlu0 %v889
        %v891 = vpop.xlane.xlu0 %890
        %v892 = vsel %vm804, %v793, 0.0
        %893 = vadd.xlane.f32.xlu0 %v892
        %v894 = vpop.xlane.xlu0 %893
        %v895 = vsel %vm804, %v798, 0.0
        %896 = vadd.xlane.f32.xlu0 %v895
        %v897 = vpop.xlane.xlu0 %896
        %v898 = vsel %vm804, %v801, 0.0
        %899 = vadd.xlane.f32.xlu0 %v898
        %v900 = vpop.xlane.xlu0 %899
        %v901 = vmul.f32 %v678, %v678
        %v902 = vmul.f32 %v681, %v681
        %v903 = vmul.f32 %v686, %v686
        %v904 = vmul.f32 %v689, %v689
        %v905 = vmul.f32 %v694, %v694
        %v906 = vmul.f32 %v697, %v697
        %v907 = vmul.f32 %v702, %v702
        %v908 = vmul.f32 %v705, %v705
        %v909 = vmul.f32 %v710, %v710
        %v910 = vmul.f32 %v713, %v713
        %v911 = vmul.f32 %v718, %v718
        %v912 = vmul.f32 %v721, %v721
        %v913 = vmul.f32 %v726, %v726
        %v914 = vmul.f32 %v729, %v729
        %v915 = vmul.f32 %v734, %v734
        %v916 = vmul.f32 %v737, %v737
        %v917 = vmul.f32 %v742, %v742
        %v918 = vmul.f32 %v745, %v745
        %v919 = vmul.f32 %v750, %v750
        %v920 = vmul.f32 %v753, %v753
        %v921 = vmul.f32 %v758, %v758
        %v922 = vmul.f32 %v761, %v761
        %v923 = vmul.f32 %v766, %v766
        %v924 = vmul.f32 %v769, %v769
        %v925 = vmul.f32 %v774, %v774
        %v926 = vmul.f32 %v777, %v777
        %v927 = vmul.f32 %v782, %v782
        %v928 = vmul.f32 %v785, %v785
        %v929 = vmul.f32 %v790, %v790
        %v930 = vmul.f32 %v793, %v793
        %v931 = vmul.f32 %v798, %v798
        %v932 = vmul.f32 %v801, %v801
        %v933 = vsel %vm804, %v901, 0.0
        %934 = vadd.xlane.f32.xlu0 %v933
        %v935 = vpop.xlane.xlu0 %934
        %v936 = vsel %vm804, %v902, 0.0
        %937 = vadd.xlane.f32.xlu0 %v936
        %v938 = vpop.xlane.xlu0 %937
        %v939 = vsel %vm804, %v903, 0.0
        %940 = vadd.xlane.f32.xlu0 %v939
        %v941 = vpop.xlane.xlu0 %940
        %v942 = vsel %vm804, %v904, 0.0
        %943 = vadd.xlane.f32.xlu0 %v942
        %v944 = vpop.xlane.xlu0 %943
        %v945 = vsel %vm804, %v905, 0.0
        %946 = vadd.xlane.f32.xlu0 %v945
        %v947 = vpop.xlane.xlu0 %946
        %v948 = vsel %vm804, %v906, 0.0
        %949 = vadd.xlane.f32.xlu0 %v948
        %v950 = vpop.xlane.xlu0 %949
        %v951 = vsel %vm804, %v907, 0.0
        %952 = vadd.xlane.f32.xlu0 %v951
        %v953 = vpop.xlane.xlu0 %952
        %v954 = vsel %vm804, %v908, 0.0
        %955 = vadd.xlane.f32.xlu0 %v954
        %v956 = vpop.xlane.xlu0 %955
        %v957 = vsel %vm804, %v909, 0.0
        %958 = vadd.xlane.f32.xlu0 %v957
        %v959 = vpop.xlane.xlu0 %958
        %v960 = vsel %vm804, %v910, 0.0
        %961 = vadd.xlane.f32.xlu0 %v960
        %v962 = vpop.xlane.xlu0 %961
        %v963 = vsel %vm804, %v911, 0.0
        %964 = vadd.xlane.f32.xlu0 %v963
        %v965 = vpop.xlane.xlu0 %964
        %v966 = vsel %vm804, %v912, 0.0
        %967 = vadd.xlane.f32.xlu0 %v966
        %v968 = vpop.xlane.xlu0 %967
        %v969 = vsel %vm804, %v913, 0.0
        %970 = vadd.xlane.f32.xlu0 %v969
        %v971 = vpop.xlane.xlu0 %970
        %v972 = vsel %vm804, %v914, 0.0
        %973 = vadd.xlane.f32.xlu0 %v972
        %v974 = vpop.xlane.xlu0 %973
        %v975 = vsel %vm804, %v915, 0.0
        %976 = vadd.xlane.f32.xlu0 %v975
        %v977 = vpop.xlane.xlu0 %976
        %v978 = vsel %vm804, %v916, 0.0
        %979 = vadd.xlane.f32.xlu0 %v978
        %v980 = vpop.xlane.xlu0 %979
        %v981 = vsel %vm804, %v917, 0.0
        %982 = vadd.xlane.f32.xlu0 %v981
        %v983 = vpop.xlane.xlu0 %982
        %v984 = vsel %vm804, %v918, 0.0
        %985 = vadd.xlane.f32.xlu0 %v984
        %v986 = vpop.xlane.xlu0 %985
        %v987 = vsel %vm804, %v919, 0.0
        %988 = vadd.xlane.f32.xlu0 %v987
        %v989 = vpop.xlane.xlu0 %988
        %v990 = vsel %vm804, %v920, 0.0
        %991 = vadd.xlane.f32.xlu0 %v990
        %v992 = vpop.xlane.xlu0 %991
        %v993 = vsel %vm804, %v921, 0.0
        %994 = vadd.xlane.f32.xlu0 %v993
        %v995 = vpop.xlane.xlu0 %994
        %v996 = vsel %vm804, %v922, 0.0
        %997 = vadd.xlane.f32.xlu0 %v996
        %v998 = vpop.xlane.xlu0 %997
        %v999 = vsel %vm804, %v923, 0.0
        %1000 = vadd.xlane.f32.xlu0 %v999
        %v1001 = vpop.xlane.xlu0 %1000
        %v1002 = vsel %vm804, %v924, 0.0
        %1003 = vadd.xlane.f32.xlu0 %v1002
        %v1004 = vpop.xlane.xlu0 %1003
        %v1005 = vsel %vm804, %v925, 0.0
        %1006 = vadd.xlane.f32.xlu0 %v1005
        %v1007 = vpop.xlane.xlu0 %1006
        %v1008 = vsel %vm804, %v926, 0.0
        %1009 = vadd.xlane.f32.xlu0 %v1008
        %v1010 = vpop.xlane.xlu0 %1009
        %v1011 = vsel %vm804, %v927, 0.0
        %1012 = vadd.xlane.f32.xlu0 %v1011
        %v1013 = vpop.xlane.xlu0 %1012
        %v1014 = vsel %vm804, %v928, 0.0
        %1015 = vadd.xlane.f32.xlu0 %v1014
        %v1016 = vpop.xlane.xlu0 %1015
        %v1017 = vsel %vm804, %v929, 0.0
        %1018 = vadd.xlane.f32.xlu0 %v1017
        %v1019 = vpop.xlane.xlu0 %1018
        %v1020 = vsel %vm804, %v930, 0.0
        %1021 = vadd.xlane.f32.xlu0 %v1020
        %v1022 = vpop.xlane.xlu0 %1021
        %v1023 = vsel %vm804, %v931, 0.0
        %1024 = vadd.xlane.f32.xlu0 %v1023
        %v1025 = vpop.xlane.xlu0 %1024
        %v1026 = vsel %vm804, %v932, 0.0
        %1027 = vadd.xlane.f32.xlu0 %v1026
        %v1028 = vpop.xlane.xlu0 %1027
        %v1029 = vmul.f32 %v807, 0.020408163
        %v1030 = vmul.f32 %v810, 0.020408163
        %v1031 = vmul.f32 %v813, 0.020408163
        %v1032 = vmul.f32 %v816, 0.020408163
        %v1033 = vmul.f32 %v819, 0.020408163
        %v1034 = vmul.f32 %v822, 0.020408163
        %v1035 = vmul.f32 %v825, 0.020408163
        %v1036 = vmul.f32 %v828, 0.020408163
        %v1037 = vmul.f32 %v831, 0.020408163
        %v1038 = vmul.f32 %v834, 0.020408163
        %v1039 = vmul.f32 %v837, 0.020408163
        %v1040 = vmul.f32 %v840, 0.020408163
        %v1041 = vmul.f32 %v843, 0.020408163
        %v1042 = vmul.f32 %v846, 0.020408163
        %v1043 = vmul.f32 %v849, 0.020408163
        %v1044 = vmul.f32 %v852, 0.020408163
        %v1045 = vmul.f32 %v855, 0.020408163
        %v1046 = vmul.f32 %v858, 0.020408163
        %v1047 = vmul.f32 %v861, 0.020408163
        %v1048 = vmul.f32 %v864, 0.020408163
        %v1049 = vmul.f32 %v867, 0.020408163
        %v1050 = vmul.f32 %v870, 0.020408163
        %v1051 = vmul.f32 %v873, 0.020408163
        %v1052 = vmul.f32 %v876, 0.020408163
        %v1053 = vmul.f32 %v879, 0.020408163
        %v1054 = vmul.f32 %v882, 0.020408163
        %v1055 = vmul.f32 %v885, 0.020408163
        %v1056 = vmul.f32 %v888, 0.020408163
        %v1057 = vmul.f32 %v891, 0.020408163
        %v1058 = vmul.f32 %v894, 0.020408163
        %v1059 = vmul.f32 %v897, 0.020408163
        %v1060 = vmul.f32 %v900, 0.020408163
        %v1061 = vmul.f32 %v935, 0.020408163
        %v1062 = vmul.f32 %v938, 0.020408163
        %v1063 = vmul.f32 %v941, 0.020408163
        %v1064 = vmul.f32 %v944, 0.020408163
        %v1065 = vmul.f32 %v947, 0.020408163
        %v1066 = vmul.f32 %v950, 0.020408163
        %v1067 = vmul.f32 %v953, 0.020408163
        %v1068 = vmul.f32 %v956, 0.020408163
        %v1069 = vmul.f32 %v959, 0.020408163
        %v1070 = vmul.f32 %v962, 0.020408163
        %v1071 = vmul.f32 %v965, 0.020408163
        %v1072 = vmul.f32 %v968, 0.020408163
        %v1073 = vmul.f32 %v971, 0.020408163
        %v1074 = vmul.f32 %v974, 0.020408163
        %v1075 = vmul.f32 %v977, 0.020408163
        %v1076 = vmul.f32 %v980, 0.020408163
        %v1077 = vmul.f32 %v983, 0.020408163
        %v1078 = vmul.f32 %v986, 0.020408163
        %v1079 = vmul.f32 %v989, 0.020408163
        %v1080 = vmul.f32 %v992, 0.020408163
        %v1081 = vmul.f32 %v995, 0.020408163
        %v1082 = vmul.f32 %v998, 0.020408163
        %v1083 = vmul.f32 %v1001, 0.020408163
        %v1084 = vmul.f32 %v1004, 0.020408163
        %v1085 = vmul.f32 %v1007, 0.020408163
        %v1086 = vmul.f32 %v1010, 0.020408163
        %v1087 = vmul.f32 %v1013, 0.020408163
        %v1088 = vmul.f32 %v1016, 0.020408163
        %v1089 = vmul.f32 %v1019, 0.020408163
        %v1090 = vmul.f32 %v1022, 0.020408163
        %v1091 = vmul.f32 %v1025, 0.020408163
        %v1092 = vmul.f32 %v1028, 0.020408163
        %v1093 = vmul.f32 %v1029, %v1029
        %v1094 = vmul.f32 %v1030, %v1030
        %v1095 = vmul.f32 %v1031, %v1031
        %v1096 = vmul.f32 %v1032, %v1032
        %v1097 = vmul.f32 %v1033, %v1033
        %v1098 = vmul.f32 %v1034, %v1034
        %v1099 = vmul.f32 %v1035, %v1035
        %v1100 = vmul.f32 %v1036, %v1036
        %v1101 = vmul.f32 %v1037, %v1037
        %v1102 = vmul.f32 %v1038, %v1038
        %v1103 = vmul.f32 %v1039, %v1039
        %v1104 = vmul.f32 %v1040, %v1040
        %v1105 = vmul.f32 %v1041, %v1041
        %v1106 = vmul.f32 %v1042, %v1042
        %v1107 = vmul.f32 %v1043, %v1043
        %v1108 = vmul.f32 %v1044, %v1044
        %v1109 = vmul.f32 %v1045, %v1045
        %v1110 = vmul.f32 %v1046, %v1046
        %v1111 = vmul.f32 %v1047, %v1047
        %v1112 = vmul.f32 %v1048, %v1048
        %v1113 = vmul.f32 %v1049, %v1049
        %v1114 = vmul.f32 %v1050, %v1050
        %v1115 = vmul.f32 %v1051, %v1051
        %v1116 = vmul.f32 %v1052, %v1052
        %v1117 = vmul.f32 %v1053, %v1053
        %v1118 = vmul.f32 %v1054, %v1054
        %v1119 = vmul.f32 %v1055, %v1055
        %v1120 = vmul.f32 %v1056, %v1056
        %v1121 = vmul.f32 %v1057, %v1057
        %v1122 = vmul.f32 %v1058, %v1058
        %v1123 = vmul.f32 %v1059, %v1059
        %v1124 = vmul.f32 %v1060, %v1060
        %v1125 = vsub.f32 %v1061, %v1093
        %v1126 = vsub.f32 %v1062, %v1094
        %v1127 = vsub.f32 %v1063, %v1095
        %v1128 = vsub.f32 %v1064, %v1096
        %v1129 = vsub.f32 %v1065, %v1097
        %v1130 = vsub.f32 %v1066, %v1098
        %v1131 = vsub.f32 %v1067, %v1099
        %v1132 = vsub.f32 %v1068, %v1100
        %v1133 = vsub.f32 %v1069, %v1101
        %v1134 = vsub.f32 %v1070, %v1102
        %v1135 = vsub.f32 %v1071, %v1103
        %v1136 = vsub.f32 %v1072, %v1104
        %v1137 = vsub.f32 %v1073, %v1105
        %v1138 = vsub.f32 %v1074, %v1106
        %v1139 = vsub.f32 %v1075, %v1107
        %v1140 = vsub.f32 %v1076, %v1108
        %v1141 = vsub.f32 %v1077, %v1109
        %v1142 = vsub.f32 %v1078, %v1110
        %v1143 = vsub.f32 %v1079, %v1111
        %v1144 = vsub.f32 %v1080, %v1112
        %v1145 = vsub.f32 %v1081, %v1113
        %v1146 = vsub.f32 %v1082, %v1114
        %v1147 = vsub.f32 %v1083, %v1115
        %v1148 = vsub.f32 %v1084, %v1116
        %v1149 = vsub.f32 %v1085, %v1117
        %v1150 = vsub.f32 %v1086, %v1118
        %v1151 = vsub.f32 %v1087, %v1119
        %v1152 = vsub.f32 %v1088, %v1120
        %v1153 = vsub.f32 %v1089, %v1121
        %v1154 = vsub.f32 %v1090, %v1122
        %v1155 = vsub.f32 %v1091, %v1123
        %v1156 = vsub.f32 %v1092, %v1124
        %v1157 = vld [vmem:[%s260] sm:$0xff]
        %v1158 = vld [vmem:[%s260 + $0x8] sm:$0xff]
        %v1159 = vld [vmem:[%s260 + $0x10] sm:$0xff]
        %v1160 = vld [vmem:[%s260 + $0x18] sm:$0xff]
        %v1161 = vld [vmem:[%s260 + $0x20] sm:$0xff]
        %v1162 = vld [vmem:[%s260 + $0x28] sm:$0xff]
        %v1163 = vld [vmem:[%s260 + $0x30] sm:$0xff]
        %v1164 = vld [vmem:[%s260 + $0x38] sm:$0xff]
        %v1165 = vld [vmem:[%s260 + $0x40] sm:$0xff]
        %v1166 = vld [vmem:[%s260 + $0x48] sm:$0xff]
        %v1167 = vld [vmem:[%s260 + $0x50] sm:$0xff]
        %v1168 = vld [vmem:[%s260 + $0x58] sm:$0xff]
        %v1169 = vld [vmem:[%s260 + $0x60] sm:$0xff]
        %v1170 = vld [vmem:[%s260 + $0x68] sm:$0xff]
        %v1171 = vld [vmem:[%s260 + $0x70] sm:$0xff]
        %v1172 = vld [vmem:[%s260 + $0x78] sm:$0xff]
        %v1173 = vld [vmem:[%s260 + $0x80] sm:$0xff]
        %v1174 = vld [vmem:[%s260 + $0x88] sm:$0xff]
        %v1175 = vld [vmem:[%s260 + $0x90] sm:$0xff]
        %v1176 = vld [vmem:[%s260 + $0x98] sm:$0xff]
        %v1177 = vld [vmem:[%s260 + $0xa0] sm:$0xff]
        %v1178 = vld [vmem:[%s260 + $0xa8] sm:$0xff]
        %v1179 = vld [vmem:[%s260 + $0xb0] sm:$0xff]
        %v1180 = vld [vmem:[%s260 + $0xb8] sm:$0xff]
        %v1181 = vld [vmem:[%s260 + $0xc0] sm:$0xff]
        %v1182 = vld [vmem:[%s260 + $0xc8] sm:$0xff]
        %v1183 = vld [vmem:[%s260 + $0xd0] sm:$0xff]
        %v1184 = vld [vmem:[%s260 + $0xd8] sm:$0xff]
        %v1185 = vld [vmem:[%s260 + $0xe0] sm:$0xff]
        %v1186 = vld [vmem:[%s260 + $0xe8] sm:$0xff]
        %v1187 = vld [vmem:[%s260 + $0xf0] sm:$0xff]
        %v1188 = vld [vmem:[%s260 + $0xf8] sm:$0xff]
        %v1189 = vadd.f32 %v1125, 1e-05
        %v1190 = vadd.f32 %v1126, 1e-05
        %v1191 = vadd.f32 %v1127, 1e-05
        %v1192 = vadd.f32 %v1128, 1e-05
        %v1193 = vadd.f32 %v1129, 1e-05
        %v1194 = vadd.f32 %v1130, 1e-05
        %v1195 = vadd.f32 %v1131, 1e-05
        %v1196 = vadd.f32 %v1132, 1e-05
        %v1197 = vadd.f32 %v1133, 1e-05
        %v1198 = vadd.f32 %v1134, 1e-05
        %v1199 = vadd.f32 %v1135, 1e-05
        %v1200 = vadd.f32 %v1136, 1e-05
        %v1201 = vadd.f32 %v1137, 1e-05
        %v1202 = vadd.f32 %v1138, 1e-05
        %v1203 = vadd.f32 %v1139, 1e-05
        %v1204 = vadd.f32 %v1140, 1e-05
        %v1205 = vadd.f32 %v1141, 1e-05
        %v1206 = vadd.f32 %v1142, 1e-05
        %v1207 = vadd.f32 %v1143, 1e-05
        %v1208 = vadd.f32 %v1144, 1e-05
        %v1209 = vadd.f32 %v1145, 1e-05
        %v1210 = vadd.f32 %v1146, 1e-05
        %v1211 = vadd.f32 %v1147, 1e-05
        %v1212 = vadd.f32 %v1148, 1e-05
        %v1213 = vadd.f32 %v1149, 1e-05
        %v1214 = vadd.f32 %v1150, 1e-05
        %v1215 = vadd.f32 %v1151, 1e-05
        %v1216 = vadd.f32 %v1152, 1e-05
        %v1217 = vadd.f32 %v1153, 1e-05
        %v1218 = vadd.f32 %v1154, 1e-05
        %v1219 = vadd.f32 %v1155, 1e-05
        %v1220 = vadd.f32 %v1156, 1e-05
        %v1221 = vrsqrt.pop %v1189
        %v1222 = vrsqrt.pop %v1190
        %v1223 = vrsqrt.pop %v1191
        %v1224 = vrsqrt.pop %v1192
        %v1225 = vrsqrt.pop %v1193
        %v1226 = vrsqrt.pop %v1194
        %v1227 = vrsqrt.pop %v1195
        %v1228 = vrsqrt.pop %v1196
        %v1229 = vrsqrt.pop %v1197
        %v1230 = vrsqrt.pop %v1198
        %v1231 = vrsqrt.pop %v1199
        %v1232 = vrsqrt.pop %v1200
        %v1233 = vrsqrt.pop %v1201
        %v1234 = vrsqrt.pop %v1202
        %v1235 = vrsqrt.pop %v1203
        %v1236 = vrsqrt.pop %v1204
        %v1237 = vrsqrt.pop %v1205
        %v1238 = vrsqrt.pop %v1206
        %v1239 = vrsqrt.pop %v1207
        %v1240 = vrsqrt.pop %v1208
        %v1241 = vrsqrt.pop %v1209
        %v1242 = vrsqrt.pop %v1210
        %v1243 = vrsqrt.pop %v1211
        %v1244 = vrsqrt.pop %v1212
        %v1245 = vrsqrt.pop %v1213
        %v1246 = vrsqrt.pop %v1214
        %v1247 = vrsqrt.pop %v1215
        %v1248 = vrsqrt.pop %v1216
        %v1249 = vrsqrt.pop %v1217
        %v1250 = vrsqrt.pop %v1218
        %v1251 = vrsqrt.pop %v1219
        %v1252 = vrsqrt.pop %v1220
        %v1253 = vmul.f32 %v1157, %v1221
        %v1254 = vmul.f32 %v1158, %v1222
        %v1255 = vmul.f32 %v1159, %v1223
        %v1256 = vmul.f32 %v1160, %v1224
        %v1257 = vmul.f32 %v1161, %v1225
        %v1258 = vmul.f32 %v1162, %v1226
        %v1259 = vmul.f32 %v1163, %v1227
        %v1260 = vmul.f32 %v1164, %v1228
        %v1261 = vmul.f32 %v1165, %v1229
        %v1262 = vmul.f32 %v1166, %v1230
        %v1263 = vmul.f32 %v1167, %v1231
        %v1264 = vmul.f32 %v1168, %v1232
        %v1265 = vmul.f32 %v1169, %v1233
        %v1266 = vmul.f32 %v1170, %v1234
        %v1267 = vmul.f32 %v1171, %v1235
        %v1268 = vmul.f32 %v1172, %v1236
        %v1269 = vmul.f32 %v1173, %v1237
        %v1270 = vmul.f32 %v1174, %v1238
        %v1271 = vmul.f32 %v1175, %v1239
        %v1272 = vmul.f32 %v1176, %v1240
        %v1273 = vmul.f32 %v1177, %v1241
        %v1274 = vmul.f32 %v1178, %v1242
        %v1275 = vmul.f32 %v1179, %v1243
        %v1276 = vmul.f32 %v1180, %v1244
        %v1277 = vmul.f32 %v1181, %v1245
        %v1278 = vmul.f32 %v1182, %v1246
        %v1279 = vmul.f32 %v1183, %v1247
        %v1280 = vmul.f32 %v1184, %v1248
        %v1281 = vmul.f32 %v1185, %v1249
        %v1282 = vmul.f32 %v1186, %v1250
        %v1283 = vmul.f32 %v1187, %v1251
        %v1284 = vmul.f32 %v1188, %v1252
        %v1285 = vld [vmem:[%s303] sm:$0xff]
        %v1286 = vld [vmem:[%s303 + $0x8] sm:$0xff]
        %v1287 = vld [vmem:[%s303 + $0x10] sm:$0xff]
        %v1288 = vld [vmem:[%s303 + $0x18] sm:$0xff]
        %v1289 = vld [vmem:[%s303 + $0x20] sm:$0xff]
        %v1290 = vld [vmem:[%s303 + $0x28] sm:$0xff]
        %v1291 = vld [vmem:[%s303 + $0x30] sm:$0xff]
        %v1292 = vld [vmem:[%s303 + $0x38] sm:$0xff]
        %v1293 = vld [vmem:[%s303 + $0x40] sm:$0xff]
        %v1294 = vld [vmem:[%s303 + $0x48] sm:$0xff]
        %v1295 = vld [vmem:[%s303 + $0x50] sm:$0xff]
        %v1296 = vld [vmem:[%s303 + $0x58] sm:$0xff]
        %v1297 = vld [vmem:[%s303 + $0x60] sm:$0xff]
        %v1298 = vld [vmem:[%s303 + $0x68] sm:$0xff]
        %v1299 = vld [vmem:[%s303 + $0x70] sm:$0xff]
        %v1300 = vld [vmem:[%s303 + $0x78] sm:$0xff]
        %v1301 = vld [vmem:[%s303 + $0x80] sm:$0xff]
        %v1302 = vld [vmem:[%s303 + $0x88] sm:$0xff]
        %v1303 = vld [vmem:[%s303 + $0x90] sm:$0xff]
        %v1304 = vld [vmem:[%s303 + $0x98] sm:$0xff]
        %v1305 = vld [vmem:[%s303 + $0xa0] sm:$0xff]
        %v1306 = vld [vmem:[%s303 + $0xa8] sm:$0xff]
        %v1307 = vld [vmem:[%s303 + $0xb0] sm:$0xff]
        %v1308 = vld [vmem:[%s303 + $0xb8] sm:$0xff]
        %v1309 = vld [vmem:[%s303 + $0xc0] sm:$0xff]
        %v1310 = vld [vmem:[%s303 + $0xc8] sm:$0xff]
        %v1311 = vld [vmem:[%s303 + $0xd0] sm:$0xff]
        %v1312 = vld [vmem:[%s303 + $0xd8] sm:$0xff]
        %v1313 = vld [vmem:[%s303 + $0xe0] sm:$0xff]
        %v1314 = vld [vmem:[%s303 + $0xe8] sm:$0xff]
        %v1315 = vld [vmem:[%s303 + $0xf0] sm:$0xff]
        %v1316 = vld [vmem:[%s303 + $0xf8] sm:$0xff]
        %v1317 = vmul.f32 %v1029, %v1253
        %v1318 = vmul.f32 %v1030, %v1254
        %v1319 = vmul.f32 %v1031, %v1255
        %v1320 = vmul.f32 %v1032, %v1256
        %v1321 = vmul.f32 %v1033, %v1257
        %v1322 = vmul.f32 %v1034, %v1258
        %v1323 = vmul.f32 %v1035, %v1259
        %v1324 = vmul.f32 %v1036, %v1260
        %v1325 = vmul.f32 %v1037, %v1261
        %v1326 = vmul.f32 %v1038, %v1262
        %v1327 = vmul.f32 %v1039, %v1263
        %v1328 = vmul.f32 %v1040, %v1264
        %v1329 = vmul.f32 %v1041, %v1265
        %v1330 = vmul.f32 %v1042, %v1266
        %v1331 = vmul.f32 %v1043, %v1267
        %v1332 = vmul.f32 %v1044, %v1268
        %v1333 = vmul.f32 %v1045, %v1269
        %v1334 = vmul.f32 %v1046, %v1270
        %v1335 = vmul.f32 %v1047, %v1271
        %v1336 = vmul.f32 %v1048, %v1272
        %v1337 = vmul.f32 %v1049, %v1273
        %v1338 = vmul.f32 %v1050, %v1274
        %v1339 = vmul.f32 %v1051, %v1275
        %v1340 = vmul.f32 %v1052, %v1276
        %v1341 = vmul.f32 %v1053, %v1277
        %v1342 = vmul.f32 %v1054, %v1278
        %v1343 = vmul.f32 %v1055, %v1279
        %v1344 = vmul.f32 %v1056, %v1280
        %v1345 = vmul.f32 %v1057, %v1281
        %v1346 = vmul.f32 %v1058, %v1282
        %v1347 = vmul.f32 %v1059, %v1283
        %v1348 = vmul.f32 %v1060, %v1284
        %v1349 = vsub.f32 %v1285, %v1317
        %v1350 = vsub.f32 %v1286, %v1318
        %v1351 = vsub.f32 %v1287, %v1319
        %v1352 = vsub.f32 %v1288, %v1320
        %v1353 = vsub.f32 %v1289, %v1321
        %v1354 = vsub.f32 %v1290, %v1322
        %v1355 = vsub.f32 %v1291, %v1323
        %v1356 = vsub.f32 %v1292, %v1324
        %v1357 = vsub.f32 %v1293, %v1325
        %v1358 = vsub.f32 %v1294, %v1326
        %v1359 = vsub.f32 %v1295, %v1327
        %v1360 = vsub.f32 %v1296, %v1328
        %v1361 = vsub.f32 %v1297, %v1329
        %v1362 = vsub.f32 %v1298, %v1330
        %v1363 = vsub.f32 %v1299, %v1331
        %v1364 = vsub.f32 %v1300, %v1332
        %v1365 = vsub.f32 %v1301, %v1333
        %v1366 = vsub.f32 %v1302, %v1334
        %v1367 = vsub.f32 %v1303, %v1335
        %v1368 = vsub.f32 %v1304, %v1336
        %v1369 = vsub.f32 %v1305, %v1337
        %v1370 = vsub.f32 %v1306, %v1338
        %v1371 = vsub.f32 %v1307, %v1339
        %v1372 = vsub.f32 %v1308, %v1340
        %v1373 = vsub.f32 %v1309, %v1341
        %v1374 = vsub.f32 %v1310, %v1342
        %v1375 = vsub.f32 %v1311, %v1343
        %v1376 = vsub.f32 %v1312, %v1344
        %v1377 = vsub.f32 %v1313, %v1345
        %v1378 = vsub.f32 %v1314, %v1346
        %v1379 = vsub.f32 %v1315, %v1347
        %v1380 = vsub.f32 %v1316, %v1348
        %1382 = vset.pattern.permute.xlu0 0
        %1383 = vperm.xlu0 %1382, %v1253
        %v1384 = vpop.permute.xlu0 %1383
        %1387 = vset.pattern.permute.xlu0 0
        %1388 = vperm.xlu0 %1387, %v1254
        %v1389 = vpop.permute.xlu0 %1388
        %1392 = vset.pattern.permute.xlu0 0
        %1393 = vperm.xlu0 %1392, %v1255
        %v1394 = vpop.permute.xlu0 %1393
        %1397 = vset.pattern.permute.xlu0 0
        %1398 = vperm.xlu0 %1397, %v1256
        %v1399 = vpop.permute.xlu0 %1398
        %1402 = vset.pattern.permute.xlu0 0
        %1403 = vperm.xlu0 %1402, %v1257
        %v1404 = vpop.permute.xlu0 %1403
        %1407 = vset.pattern.permute.xlu0 0
        %1408 = vperm.xlu0 %1407, %v1258
        %v1409 = vpop.permute.xlu0 %1408
        %1412 = vset.pattern.permute.xlu0 0
        %1413 = vperm.xlu0 %1412, %v1259
        %v1414 = vpop.permute.xlu0 %1413
        %1417 = vset.pattern.permute.xlu0 0
        %1418 = vperm.xlu0 %1417, %v1260
        %v1419 = vpop.permute.xlu0 %1418
        %1422 = vset.pattern.permute.xlu0 0
        %1423 = vperm.xlu0 %1422, %v1261
        %v1424 = vpop.permute.xlu0 %1423
        %1427 = vset.pattern.permute.xlu0 0
        %1428 = vperm.xlu0 %1427, %v1262
        %v1429 = vpop.permute.xlu0 %1428
        %1432 = vset.pattern.permute.xlu0 0
        %1433 = vperm.xlu0 %1432, %v1263
        %v1434 = vpop.permute.xlu0 %1433
        %1437 = vset.pattern.permute.xlu0 0
        %1438 = vperm.xlu0 %1437, %v1264
        %v1439 = vpop.permute.xlu0 %1438
        %1442 = vset.pattern.permute.xlu0 0
        %1443 = vperm.xlu0 %1442, %v1265
        %v1444 = vpop.permute.xlu0 %1443
        %1447 = vset.pattern.permute.xlu0 0
        %1448 = vperm.xlu0 %1447, %v1266
        %v1449 = vpop.permute.xlu0 %1448
        %1452 = vset.pattern.permute.xlu0 0
        %1453 = vperm.xlu0 %1452, %v1267
        %v1454 = vpop.permute.xlu0 %1453
        %1457 = vset.pattern.permute.xlu0 0
        %1458 = vperm.xlu0 %1457, %v1268
        %v1459 = vpop.permute.xlu0 %1458
        %1462 = vset.pattern.permute.xlu0 0
        %1463 = vperm.xlu0 %1462, %v1269
        %v1464 = vpop.permute.xlu0 %1463
        %1467 = vset.pattern.permute.xlu0 0
        %1468 = vperm.xlu0 %1467, %v1270
        %v1469 = vpop.permute.xlu0 %1468
        %1472 = vset.pattern.permute.xlu0 0
        %1473 = vperm.xlu0 %1472, %v1271
        %v1474 = vpop.permute.xlu0 %1473
        %1477 = vset.pattern.permute.xlu0 0
        %1478 = vperm.xlu0 %1477, %v1272
        %v1479 = vpop.permute.xlu0 %1478
        %1482 = vset.pattern.permute.xlu0 0
        %1483 = vperm.xlu0 %1482, %v1273
        %v1484 = vpop.permute.xlu0 %1483
        %1487 = vset.pattern.permute.xlu0 0
        %1488 = vperm.xlu0 %1487, %v1274
        %v1489 = vpop.permute.xlu0 %1488
        %1492 = vset.pattern.permute.xlu0 0
        %1493 = vperm.xlu0 %1492, %v1275
        %v1494 = vpop.permute.xlu0 %1493
        %1497 = vset.pattern.permute.xlu0 0
        %1498 = vperm.xlu0 %1497, %v1276
        %v1499 = vpop.permute.xlu0 %1498
        %1502 = vset.pattern.permute.xlu0 0
        %1503 = vperm.xlu0 %1502, %v1277
        %v1504 = vpop.permute.xlu0 %1503
        %1507 = vset.pattern.permute.xlu0 0
        %1508 = vperm.xlu0 %1507, %v1278
        %v1509 = vpop.permute.xlu0 %1508
        %1512 = vset.pattern.permute.xlu0 0
        %1513 = vperm.xlu0 %1512, %v1279
        %v1514 = vpop.permute.xlu0 %1513
        %1517 = vset.pattern.permute.xlu0 0
        %1518 = vperm.xlu0 %1517, %v1280
        %v1519 = vpop.permute.xlu0 %1518
        %1522 = vset.pattern.permute.xlu0 0
        %1523 = vperm.xlu0 %1522, %v1281
        %v1524 = vpop.permute.xlu0 %1523
        %1527 = vset.pattern.permute.xlu0 0
        %1528 = vperm.xlu0 %1527, %v1282
        %v1529 = vpop.permute.xlu0 %1528
        %1532 = vset.pattern.permute.xlu0 0
        %1533 = vperm.xlu0 %1532, %v1283
        %v1534 = vpop.permute.xlu0 %1533
        %1537 = vset.pattern.permute.xlu0 0
        %1538 = vperm.xlu0 %1537, %v1284
        %v1539 = vpop.permute.xlu0 %1538
        %v1541 = vmul.f32 %v678, %v1384
        %v1542 = vmul.f32 %v681, %v1389
        %v1543 = vmul.f32 %v686, %v1394
        %v1544 = vmul.f32 %v689, %v1399
        %v1545 = vmul.f32 %v694, %v1404
        %v1546 = vmul.f32 %v697, %v1409
        %v1547 = vmul.f32 %v702, %v1414
        %v1548 = vmul.f32 %v705, %v1419
        %v1549 = vmul.f32 %v710, %v1424
        %v1550 = vmul.f32 %v713, %v1429
        %v1551 = vmul.f32 %v718, %v1434
        %v1552 = vmul.f32 %v721, %v1439
        %v1553 = vmul.f32 %v726, %v1444
        %v1554 = vmul.f32 %v729, %v1449
        %v1555 = vmul.f32 %v734, %v1454
        %v1556 = vmul.f32 %v737, %v1459
        %v1557 = vmul.f32 %v742, %v1464
        %v1558 = vmul.f32 %v745, %v1469
        %v1559 = vmul.f32 %v750, %v1474
        %v1560 = vmul.f32 %v753, %v1479
        %v1561 = vmul.f32 %v758, %v1484
        %v1562 = vmul.f32 %v761, %v1489
        %v1563 = vmul.f32 %v766, %v1494
        %v1564 = vmul.f32 %v769, %v1499
        %v1565 = vmul.f32 %v774, %v1504
        %v1566 = vmul.f32 %v777, %v1509
        %v1567 = vmul.f32 %v782, %v1514
        %v1568 = vmul.f32 %v785, %v1519
        %v1569 = vmul.f32 %v790, %v1524
        %v1570 = vmul.f32 %v793, %v1529
        %v1571 = vmul.f32 %v798, %v1534
        %v1572 = vmul.f32 %v801, %v1539
        %1574 = vset.pattern.permute.xlu0 0
        %1575 = vperm.xlu0 %1574, %v1349
        %v1576 = vpop.permute.xlu0 %1575
        %1579 = vset.pattern.permute.xlu0 0
        %1580 = vperm.xlu0 %1579, %v1350
        %v1581 = vpop.permute.xlu0 %1580
        %1584 = vset.pattern.permute.xlu0 0
        %1585 = vperm.xlu0 %1584, %v1351
        %v1586 = vpop.permute.xlu0 %1585
        %1589 = vset.pattern.permute.xlu0 0
        %1590 = vperm.xlu0 %1589, %v1352
        %v1591 = vpop.permute.xlu0 %1590
        %1594 = vset.pattern.permute.xlu0 0
        %1595 = vperm.xlu0 %1594, %v1353
        %v1596 = vpop.permute.xlu0 %1595
        %1599 = vset.pattern.permute.xlu0 0
        %1600 = vperm.xlu0 %1599, %v1354
        %v1601 = vpop.permute.xlu0 %1600
        %1604 = vset.pattern.permute.xlu0 0
        %1605 = vperm.xlu0 %1604, %v1355
        %v1606 = vpop.permute.xlu0 %1605
        %1609 = vset.pattern.permute.xlu0 0
        %1610 = vperm.xlu0 %1609, %v1356
        %v1611 = vpop.permute.xlu0 %1610
        %1614 = vset.pattern.permute.xlu0 0
        %1615 = vperm.xlu0 %1614, %v1357
        %v1616 = vpop.permute.xlu0 %1615
        %1619 = vset.pattern.permute.xlu0 0
        %1620 = vperm.xlu0 %1619, %v1358
        %v1621 = vpop.permute.xlu0 %1620
        %1624 = vset.pattern.permute.xlu0 0
        %1625 = vperm.xlu0 %1624, %v1359
        %v1626 = vpop.permute.xlu0 %1625
        %1629 = vset.pattern.permute.xlu0 0
        %1630 = vperm.xlu0 %1629, %v1360
        %v1631 = vpop.permute.xlu0 %1630
        %1634 = vset.pattern.permute.xlu0 0
        %1635 = vperm.xlu0 %1634, %v1361
        %v1636 = vpop.permute.xlu0 %1635
        %1639 = vset.pattern.permute.xlu0 0
        %1640 = vperm.xlu0 %1639, %v1362
        %v1641 = vpop.permute.xlu0 %1640
        %1644 = vset.pattern.permute.xlu0 0
        %1645 = vperm.xlu0 %1644, %v1363
        %v1646 = vpop.permute.xlu0 %1645
        %1649 = vset.pattern.permute.xlu0 0
        %1650 = vperm.xlu0 %1649, %v1364
        %v1651 = vpop.permute.xlu0 %1650
        %1654 = vset.pattern.permute.xlu0 0
        %1655 = vperm.xlu0 %1654, %v1365
        %v1656 = vpop.permute.xlu0 %1655
        %1659 = vset.pattern.permute.xlu0 0
        %1660 = vperm.xlu0 %1659, %v1366
        %v1661 = vpop.permute.xlu0 %1660
        %1664 = vset.pattern.permute.xlu0 0
        %1665 = vperm.xlu0 %1664, %v1367
        %v1666 = vpop.permute.xlu0 %1665
        %1669 = vset.pattern.permute.xlu0 0
        %1670 = vperm.xlu0 %1669, %v1368
        %v1671 = vpop.permute.xlu0 %1670
        %1674 = vset.pattern.permute.xlu0 0
        %1675 = vperm.xlu0 %1674, %v1369
        %v1676 = vpop.permute.xlu0 %1675
        %1679 = vset.pattern.permute.xlu0 0
        %1680 = vperm.xlu0 %1679, %v1370
        %v1681 = vpop.permute.xlu0 %1680
        %1684 = vset.pattern.permute.xlu0 0
        %1685 = vperm.xlu0 %1684, %v1371
        %v1686 = vpop.permute.xlu0 %1685
        %1689 = vset.pattern.permute.xlu0 0
        %1690 = vperm.xlu0 %1689, %v1372
        %v1691 = vpop.permute.xlu0 %1690
        %1694 = vset.pattern.permute.xlu0 0
        %1695 = vperm.xlu0 %1694, %v1373
        %v1696 = vpop.permute.xlu0 %1695
        %1699 = vset.pattern.permute.xlu0 0
        %1700 = vperm.xlu0 %1699, %v1374
        %v1701 = vpop.permute.xlu0 %1700
        %1704 = vset.pattern.permute.xlu0 0
        %1705 = vperm.xlu0 %1704, %v1375
        %v1706 = vpop.permute.xlu0 %1705
        %1709 = vset.pattern.permute.xlu0 0
        %1710 = vperm.xlu0 %1709, %v1376
        %v1711 = vpop.permute.xlu0 %1710
        %1714 = vset.pattern.permute.xlu0 0
        %1715 = vperm.xlu0 %1714, %v1377
        %v1716 = vpop.permute.xlu0 %1715
        %1719 = vset.pattern.permute.xlu0 0
        %1720 = vperm.xlu0 %1719, %v1378
        %v1721 = vpop.permute.xlu0 %1720
        %1724 = vset.pattern.permute.xlu0 0
        %1725 = vperm.xlu0 %1724, %v1379
        %v1726 = vpop.permute.xlu0 %1725
        %1729 = vset.pattern.permute.xlu0 0
        %1730 = vperm.xlu0 %1729, %v1380
        %v1731 = vpop.permute.xlu0 %1730
        %v1733 = vadd.f32 %v1541, %v1576
        %v1734 = vadd.f32 %v1542, %v1581
        %v1735 = vadd.f32 %v1543, %v1586
        %v1736 = vadd.f32 %v1544, %v1591
        %v1737 = vadd.f32 %v1545, %v1596
        %v1738 = vadd.f32 %v1546, %v1601
        %v1739 = vadd.f32 %v1547, %v1606
        %v1740 = vadd.f32 %v1548, %v1611
        %v1741 = vadd.f32 %v1549, %v1616
        %v1742 = vadd.f32 %v1550, %v1621
        %v1743 = vadd.f32 %v1551, %v1626
        %v1744 = vadd.f32 %v1552, %v1631
        %v1745 = vadd.f32 %v1553, %v1636
        %v1746 = vadd.f32 %v1554, %v1641
        %v1747 = vadd.f32 %v1555, %v1646
        %v1748 = vadd.f32 %v1556, %v1651
        %v1749 = vadd.f32 %v1557, %v1656
        %v1750 = vadd.f32 %v1558, %v1661
        %v1751 = vadd.f32 %v1559, %v1666
        %v1752 = vadd.f32 %v1560, %v1671
        %v1753 = vadd.f32 %v1561, %v1676
        %v1754 = vadd.f32 %v1562, %v1681
        %v1755 = vadd.f32 %v1563, %v1686
        %v1756 = vadd.f32 %v1564, %v1691
        %v1757 = vadd.f32 %v1565, %v1696
        %v1758 = vadd.f32 %v1566, %v1701
        %v1759 = vadd.f32 %v1567, %v1706
        %v1760 = vadd.f32 %v1568, %v1711
        %v1761 = vadd.f32 %v1569, %v1716
        %v1762 = vadd.f32 %v1570, %v1721
        %v1763 = vadd.f32 %v1571, %v1726
        %v1764 = vadd.f32 %v1572, %v1731
        %1765 = vst.msk [vmem:[%s309] sm:$0xff] %vm804, %v1733
        %1766 = vst.msk [vmem:[%s309 + $0x8] sm:$0xff] %vm804, %v1734
        %1767 = vst.msk [vmem:[%s309 + $0x10] sm:$0xff] %vm804, %v1735
        %1768 = vst.msk [vmem:[%s309 + $0x18] sm:$0xff] %vm804, %v1736
        %1769 = vst.msk [vmem:[%s309 + $0x20] sm:$0xff] %vm804, %v1737
        %1770 = vst.msk [vmem:[%s309 + $0x28] sm:$0xff] %vm804, %v1738
        %1771 = vst.msk [vmem:[%s309 + $0x30] sm:$0xff] %vm804, %v1739
        %1772 = vst.msk [vmem:[%s309 + $0x38] sm:$0xff] %vm804, %v1740
        %1773 = vst.msk [vmem:[%s309 + $0x40] sm:$0xff] %vm804, %v1741
        %1774 = vst.msk [vmem:[%s309 + $0x48] sm:$0xff] %vm804, %v1742
        %1775 = vst.msk [vmem:[%s309 + $0x50] sm:$0xff] %vm804, %v1743
        %1776 = vst.msk [vmem:[%s309 + $0x58] sm:$0xff] %vm804, %v1744
        %1777 = vst.msk [vmem:[%s309 + $0x60] sm:$0xff] %vm804, %v1745
        %1778 = vst.msk [vmem:[%s309 + $0x68] sm:$0xff] %vm804, %v1746
        %1779 = vst.msk [vmem:[%s309 + $0x70] sm:$0xff] %vm804, %v1747
        %1780 = vst.msk [vmem:[%s309 + $0x78] sm:$0xff] %vm804, %v1748
        %1781 = vst.msk [vmem:[%s309 + $0x80] sm:$0xff] %vm804, %v1749
        %1782 = vst.msk [vmem:[%s309 + $0x88] sm:$0xff] %vm804, %v1750
        %1783 = vst.msk [vmem:[%s309 + $0x90] sm:$0xff] %vm804, %v1751
        %1784 = vst.msk [vmem:[%s309 + $0x98] sm:$0xff] %vm804, %v1752
        %1785 = vst.msk [vmem:[%s309 + $0xa0] sm:$0xff] %vm804, %v1753
        %1786 = vst.msk [vmem:[%s309 + $0xa8] sm:$0xff] %vm804, %v1754
        %1787 = vst.msk [vmem:[%s309 + $0xb0] sm:$0xff] %vm804, %v1755
        %1788 = vst.msk [vmem:[%s309 + $0xb8] sm:$0xff] %vm804, %v1756
        %1789 = vst.msk [vmem:[%s309 + $0xc0] sm:$0xff] %vm804, %v1757
        %1790 = vst.msk [vmem:[%s309 + $0xc8] sm:$0xff] %vm804, %v1758
        %1791 = vst.msk [vmem:[%s309 + $0xd0] sm:$0xff] %vm804, %v1759
        %1792 = vst.msk [vmem:[%s309 + $0xd8] sm:$0xff] %vm804, %v1760
        %1793 = vst.msk [vmem:[%s309 + $0xe0] sm:$0xff] %vm804, %v1761
        %1794 = vst.msk [vmem:[%s309 + $0xe8] sm:$0xff] %vm804, %v1762
        %1795 = vst.msk [vmem:[%s309 + $0xf0] sm:$0xff] %vm804, %v1763
        %1796 = vst.msk [vmem:[%s309 + $0xf8] sm:$0xff] %vm804, %v1764
        %s1797 = smul.u32 32, %s22
        %p1798 = scmp.lt.s32.totalorder %s1797, 191
        %s1799 = scalar_select %p1798, %s1797, 191
        %s1800 = smul.addr %s1799, 8
        %s1801 = scalar_lea.vmem %s5, %s1800
        // Predicated region
        $region49: #{fwd.1} parent=39 // pred_check
          %p1802 = pneg %p160
        $region50: #{fwd.1} parent=39 // pred_check_branch
          %1804 = sbr.rel (%p1802) target = $region52
        $region51: #{fwd.1} parent=39 // pred_region
          %s1805 = smul.u32 32, %s22
        $region52: #{fwd.1} parent=39 // pred_fallthru
          _
      $region40: #{fwd.1} parent=5 // pred_fallthru
        _
      %p1806 = scmp.le.s32.totalorder 2, %s17
      // Predicated region
      $region53: #{fwd.1} parent=5 // pred_check
        %p1807 = pneg %p1806
      $region54: #{fwd.1} parent=5 // pred_check_branch
        %1809 = sbr.rel (%p1807) target = $region56
      $region55: #{fwd.1} parent=5 // pred_region
        %s1810 = ssub.s32 %s17, 2
        // Predicated region
        $region57: #{fwd.1} parent=55 // pred_check
          %p1811 = pneg %p166
        $region58: #{fwd.1} parent=55 // pred_check_branch
          %1813 = sbr.rel (%p1811) target = $region60
        $region59: #{fwd.1} parent=55 // pred_region
          %s1814 = smul.u32 32, %s23
          %p1815 = scmp.lt.s32.totalorder %s1814, 191
          %s1816 = scalar_select %p1815, %s1814, 191
          %s1817 = smul.addr %s1816, 8
          %s1818 = scalar_lea.vmem %s5, %s1817
        $region60: #{fwd.1} parent=55 // pred_fallthru
          _
      $region56: #{fwd.1} parent=5 // pred_fallthru
        _
    $region6: #{fwd.1} parent=1 // loop_footer
      %s21 = sadd.s32 1, %s17
    $region7: #{fwd.1} parent=1 // loop_footer_branch
      %16 = sbr.rel target = $region3
    $region8: #{fwd.1} parent=1 // loop_exit
      _
    %1819 = vsyncpa [#allocation3], 1
    %s1820 = scalar_lea.sflag [#allocation3], 1
    %1821 = vsyncpa %s1820, 1
    %1822 = vsyncpa [#allocation5], 1
    %s1823 = scalar_lea.sflag [#allocation5], 1
    %1824 = vsyncpa %s1823, 1

</llo_original>
